<compile_context>
chip_gen: v6e
topology: v6e:2x2x1
jax: 0.10.0
libtpu: 0.0.40
codegen_flags: <defaults>
</compile_context>

<pallas_src>
import functools

import jax
import jax.numpy as jnp
import numpy as np
from jax import lax
from jax.experimental import pallas as pl
from jax.experimental.pallas import tpu as pltpu

_MIB = 1024 * 1024


# ---------------------------------------------------------------------------
# Fused kernel: MHA (+proj+residual+LN) on the first d_ff tile, then one d_ff
# slice of the position-wise FFN per grid step, residual+LN on the last slice.
# ---------------------------------------------------------------------------
def _encoder_layer_kernel(x_ref, mask_ref,
                          wqkv_ref, bqkv_ref, wo_ref, bo_ref,
                          w1_ref, b1_ref, w2_ref, b2_ref,
                          out_ref, attn_ref,
                          xattn_bf16, acc_ref,
                          *, n_heads, qkv_dim):
    f = pl.program_id(1)
    H, D = n_heads, qkv_dim
    HD = H * D

    def layernorm(y):  # nn.LayerNorm: weight=1, bias=0, eps=1e-5, biased var
        mu = jnp.mean(y, axis=-1, keepdims=True)
        var = jnp.mean((y - mu) ** 2, axis=-1, keepdims=True)
        return (y - mu) * lax.rsqrt(var + 1e-5)

    # ---- Stage 1 (first d_ff tile only): multi-head self-attention ----------
    @pl.when(f == 0)
    def _mha():
        x_f32 = x_ref[0].astype(jnp.float32)                   # (S, E) residual
        x_bf = x_f32.astype(jnp.bfloat16)                      # bf16 MXU operand
        masked = mask_ref[0] != 0                               # hoisted out of head loop
        scale = jnp.float32(1.0 / np.sqrt(qkv_dim))

        # Fused QKV projection: one (S, E) @ (E, 3*H*D) matmul (full MXU width).
        qkv = (jnp.dot(x_bf, wqkv_ref[...], preferred_element_type=jnp.float32)
               + bqkv_ref[...]).astype(jnp.bfloat16)            # (S, 3*H*D)

        ctx_parts = []
        for h in range(n_heads):                                # static small head count
            q = qkv[:, h * D:(h + 1) * D]
            k = qkv[:, HD + h * D: HD + (h + 1) * D]
            v = qkv[:, 2 * HD + h * D: 2 * HD + (h + 1) * D]
            # scores: contract last dims directly (no explicit K transpose)
            s = lax.dot_general(q, k, (((1,), (1,)), ((), ())),
                                preferred_element_type=jnp.float32) * scale
            s = jnp.where(masked, jnp.float32(-1e9), s)         # masked_fill_(-1e9)
            s = s - jnp.max(s, axis=-1, keepdims=True)
            e = jnp.exp(s)
            a = e * pl.reciprocal(jnp.sum(e, axis=-1, keepdims=True), approx=True)
            a_bf = a.astype(jnp.bfloat16)                       # single cast, reused
            attn_ref[0, h] = a_bf                               # bf16 attention maps
            ctx_parts.append(jnp.dot(a_bf, v,
                                     preferred_element_type=jnp.float32))

        # Fused output projection: one (S, H*D) @ (H*D, E) matmul (K = H*D).
        ctx = jnp.concatenate([c.astype(jnp.bfloat16) for c in ctx_parts], axis=-1)
        proj = jnp.dot(ctx, wo_ref[...], preferred_element_type=jnp.float32)
        y = layernorm(proj + bo_ref[...] + x_f32)               # dropout = identity
        xattn_bf16[...] = y.astype(jnp.bfloat16)                # FFN matmul operand
        # FFN accumulator init: residual + conv2 bias (added once).
        acc_ref[...] = y + b2_ref[...]

    # ---- Stage 2 (every grid step): one d_ff slice of the FFN ---------------
    h1 = jnp.dot(xattn_bf16[...], w1_ref[...],
                 preferred_element_type=jnp.float32) + b1_ref[...]
    h1 = jnp.maximum(h1, 0.0)                                   # ReLU
    acc_ref[...] += jnp.dot(h1.astype(jnp.bfloat16), w2_ref[...],
                            preferred_element_type=jnp.float32)

    # ---- Finalize (last d_ff tile): LayerNorm + store ------------------------
    @pl.when(f == pl.num_programs(1) - 1)
    def _finish():
        out_ref[0] = layernorm(acc_ref[...]).astype(out_ref.dtype)


# ---------------------------------------------------------------------------
# Configuration helpers (generation-aware VMEM budget / tile size, one-time
# capability probe for single-buffered weight specs).
# ---------------------------------------------------------------------------
def _vmem_budget_bytes():
    """Scoped-VMEM limit with headroom below physical capacity."""
    try:
        cap = pltpu.get_tpu_info().vmem_capacity_bytes
    except Exception:
        cap = 64 * _MIB                      # conservative (v7x) assumption
    return int(min(cap - 16 * _MIB, 100 * _MIB))


def _default_ffn_tile(E, F, vmem_limit_bytes):
    """Prefer fully VMEM-resident FFN weights (KF == 1, no per-batch HBM
    re-stream); otherwise the largest 128-multiple divisor of F whose
    double-buffered W1/W2 tiles fit in ~1/4 of the budget."""
    full_bytes = 2 * E * F * 2               # W1 + W2 in bf16
    if F <= 128 or full_bytes <= vmem_limit_bytes // 2:
        return F
    tf = (vmem_limit_bytes // 4) // (2 * E * 2)
    tf = max(128, (tf // 128) * 128)
    while F % tf:
        tf -= 128
    return max(tf, 128)


@functools.cache
def _single_buffering_supported():
    """One-time probe: does this build accept pipeline_mode=pl.Buffered(1)?"""
    try:
        def _k(x_ref, o_ref):
            o_ref[...] = x_ref[...] + 1.0

        out = pl.pallas_call(
            _k,
            out_shape=jax.ShapeDtypeStruct((8, 128), jnp.float32),
            grid=(2,),
            in_specs=[pl.BlockSpec((8, 128), lambda i: (0, 0),
                                   pipeline_mode=pl.Buffered(1))],
            out_specs=pl.BlockSpec((8, 128), lambda i: (0, 0)),
        )(jnp.zeros((8, 128), jnp.float32))
        jax.block_until_ready(out)
        return True
    except Exception:
        return False


# ---------------------------------------------------------------------------
# Wrapper (jitted; no host sync inside)
# ---------------------------------------------------------------------------
@functools.partial(jax.jit,
                   static_argnames=("n_heads", "qkv_dim", "ffn_tile",
                                    "single_buffer", "vmem_limit_bytes"))
def _forward_impl(x, mask, params, *, n_heads, qkv_dim, ffn_tile,
                  single_buffer, vmem_limit_bytes):
    B, S, E = x.shape
    H, D = n_heads, qkv_dim
    HD = H * D
    F = params["w1"].shape[1]
    TF = ffn_tile
    assert F % TF == 0, "d_ff must be divisible by the FFN tile size"
    KF = F // TF
    ffn_resident = (KF == 1)

    def spec(shape, index_map, *, invariant):
        kwargs = {}
        if invariant and single_buffer:
            kwargs["pipeline_mode"] = pl.Buffered(1)   # single buffer: index never changes
        return pl.BlockSpec(shape, index_map, **kwargs)

    def const(shape):
        n = len(shape)
        return spec(shape, lambda b, f, n=n: (0,) * n, invariant=True)

    grid_spec = pltpu.PrefetchScalarGridSpec(
        num_scalar_prefetch=0,
        grid=(B, KF),
        in_specs=[
            pl.BlockSpec((1, S, E), lambda b, f: (b, 0, 0)),            # x
            pl.BlockSpec((1, S, S), lambda b, f: (b, 0, 0)),            # attn mask
            const((E, 3 * HD)), const((1, 3 * HD)),                     # W_qkv, b_qkv
            const((HD, E)), const((1, E)),                              # W_O, b_O
            spec((E, TF), lambda b, f: (0, f), invariant=ffn_resident),  # W1 tile
            spec((1, TF), lambda b, f: (0, f), invariant=ffn_resident),  # b1 tile
            spec((TF, E), lambda b, f: (f, 0), invariant=ffn_resident),  # W2 tile
            const((1, E)),                                              # b2
        ],
        out_specs=(
            pl.BlockSpec((1, S, E), lambda b, f: (b, 0, 0)),            # enc_out
            pl.BlockSpec((1, H, S, S), lambda b, f: (b, 0, 0, 0)),      # attention maps
        ),
        scratch_shapes=[
            pltpu.VMEM((S, E), jnp.bfloat16),   # post-MHA activations (FFN operand)
            pltpu.VMEM((S, E), jnp.float32),    # FFN accumulator (residual folded in)
        ],
    )

    call = pl.pallas_call(
        functools.partial(_encoder_layer_kernel, n_heads=n_heads, qkv_dim=qkv_dim),
        out_shape=(
            jax.ShapeDtypeStruct((B, S, E), jnp.float32),
            jax.ShapeDtypeStruct((B, H, S, S), jnp.bfloat16),
        ),
        grid_spec=grid_spec,
        compiler_params=pltpu.CompilerParams(
            dimension_semantics=("parallel", "arbitrary"),
            vmem_limit_bytes=vmem_limit_bytes),
    )
    return call(x, mask,
                params["wqkv"], params["bqkv"], params["wo"], params["bo"],
                params["w1"], params["b1"], params["w2"], params["b2"])


def encoder_layer_forward(x, mask, params, *, n_heads, qkv_dim, ffn_tile=None):
    E = x.shape[-1]
    F = params["w1"].shape[1]
    vmem_limit = _vmem_budget_bytes()
    tf = ffn_tile if ffn_tile is not None else _default_ffn_tile(E, F, vmem_limit)
    return _forward_impl(x, mask, params, n_heads=n_heads, qkv_dim=qkv_dim,
                         ffn_tile=int(tf),
                         single_buffer=_single_buffering_supported(),
                         vmem_limit_bytes=vmem_limit)


# ---------------------------------------------------------------------------
# Pure-JAX reference (mirrors the PyTorch forward, eval mode, f32 math on the
# same bf16 weights).
# ---------------------------------------------------------------------------
def _reference(x, mask, params, *, n_heads, qkv_dim):
    H, D = n_heads, qkv_dim
    HD = H * D
    B, S, E = x.shape
    f32 = lambda a: a.astype(jnp.float32)

    def ln(y):
        mu = jnp.mean(y, axis=-1, keepdims=True)
        var = jnp.mean((y - mu) ** 2, axis=-1, keepdims=True)
        return (y - mu) / jnp.sqrt(var + 1e-5)

    qkv = x @ f32(params["wqkv"]) + params["bqkv"][0]            # (B,S,3HD)

    def heads(a):
        return a.reshape(B, S, H, D).transpose(0, 2, 1, 3)       # (B,H,S,D)

    q = heads(qkv[..., :HD])
    k = heads(qkv[..., HD:2 * HD])
    v = heads(qkv[..., 2 * HD:])
    scores = jnp.einsum("bhqd,bhkd->bhqk", q, k) / np.sqrt(qkv_dim)
    scores = jnp.where(mask[:, None, :, :] != 0, -1e9, scores)
    attn = jax.nn.softmax(scores, axis=-1)
    ctx = jnp.einsum("bhqk,bhkd->bhqd", attn, v)
    ctx = ctx.transpose(0, 2, 1, 3).reshape(B, S, HD)
    out = ctx @ f32(params["wo"]) + params["bo"][0]
    mha = ln(out + x)
    h = jnp.maximum(mha @ f32(params["w1"]) + params["b1"][0], 0.0)
    y = ln(h @ f32(params["w2"]) + params["b2"][0] + mha)
    return y, attn


if __name__ == "__main__":
    # Small TPU-lane-friendly shapes consistent with the module
    # (production: S=196, E=2048, d_ff=4096, H=8, D=64).
    B, S, E = 2, 16, 128
    n_heads, qkv_dim = 4, 32
    d_ff = 256
    HD = n_heads * qkv_dim

    key = jax.random.PRNGKey(0)
    ks = jax.random.split(key, 8)

    def w(k, shape):   # bf16 weights (MXU-native); f32 accumulation in-kernel
        return (0.02 * jax.random.normal(k, shape, dtype=jnp.float32)).astype(jnp.bfloat16)

    def b(k, shape):   # biases stay f32 (added into f32 accumulators)
        return 0.02 * jax.random.normal(k, shape, dtype=jnp.float32)

    params = {
        "wqkv": w(ks[0], (E, 3 * HD)), "bqkv": b(ks[1], (1, 3 * HD)),
        "wo": w(ks[2], (HD, E)), "bo": b(ks[3], (1, E)),
        "w1": w(ks[4], (E, d_ff)), "b1": b(ks[5], (1, d_ff)),
        "w2": w(ks[6], (d_ff, E)), "b2": b(ks[7], (1, E)),
    }

    x = jax.random.normal(jax.random.PRNGKey(1), (B, S, E), dtype=jnp.float32)
    # boolean attention mask (nonzero => masked): mask out the last 4 key positions
    mask = jnp.zeros((B, S, S), dtype=jnp.int32).at[:, :, S - 4:].set(1)

    enc_out, attn = encoder_layer_forward(
        x, mask, params, n_heads=n_heads, qkv_dim=qkv_dim)
    enc_out, attn = jax.block_until_ready((enc_out, attn))

    ref_out, ref_attn = _reference(x, mask, params,
                                   n_heads=n_heads, qkv_dim=qkv_dim)
    # bf16 matmul operands / bf16 activations into the projections (reference
    # keeps activations f32) -> tolerance relaxed vs. pure f32.
    np.testing.assert_allclose(np.asarray(enc_out), np.asarray(ref_out),
                               rtol=2e-2, atol=2e-2)
    np.testing.assert_allclose(np.asarray(attn.astype(jnp.float32)),
                               np.asarray(ref_attn), rtol=2e-2, atol=2e-2)

    assert enc_out.shape == (B, S, E)
    assert attn.shape == (B, n_heads, S, S)
    print("KERNEL_OK")
</pallas_src>

<mosaic_0001>
module attributes {stable_mosaic.version = 11 : i64} {
  func.func @_k(%arg0: i32, %arg1: memref<8x128xf32, #tpu.memory_space<vmem>>, %arg2: memref<8x128xf32, #tpu.memory_space<vmem>>) attributes {dimension_semantics = [#tpu.dimension_semantics<arbitrary>], iteration_bounds = array<i64: 2>, scalar_prefetch = 0 : i64, scratch_operands = 0 : i64, tpu.core_type = #tpu.core_type<tc>, window_params = [{pipeline_mode = #tpu.pipeline_mode<synchronous>, transform_indices = @transform_0, window_bounds = array<i64: 8, 128>}, {pipeline_mode = #tpu.pipeline_mode<synchronous>, transform_indices = @transform_1, window_bounds = array<i64: 8, 128>}]} {
    %c0 = arith.constant 0 : index
    %c0_0 = arith.constant 0 : index
    %0 = vector.load %arg1[%c0, %c0_0] : memref<8x128xf32, #tpu.memory_space<vmem>>, vector<8x128xf32>
    %cst = arith.constant 1.000000e+00 : f32
    %1 = vector.broadcast %cst : f32 to vector<8x128xf32>
    %2 = arith.addf %0, %1 : vector<8x128xf32>
    %c0_1 = arith.constant 0 : index
    %c0_2 = arith.constant 0 : index
    %3 = vector.load %arg2[%c0_1, %c0_2] : memref<8x128xf32, #tpu.memory_space<vmem>>, vector<8x128xf32>
    tpu.vector_store %arg2[%c0_1, %c0_2], %2 {strides = array<i32>} : memref<8x128xf32, #tpu.memory_space<vmem>>, vector<8x128xf32>,
    return
  }
  func.func @transform_0(%arg0: i32) -> (i32, i32) {
    %c0_i32 = arith.constant 0 : i32
    %c0_i32_0 = arith.constant 0 : i32
    %c0_i32_1 = arith.constant 0 : i32
    return %c0_i32, %c0_i32_0 : i32, i32
  }
  func.func @transform_1(%arg0: i32) -> (i32, i32) {
    %c0_i32 = arith.constant 0 : i32
    %c0_i32_0 = arith.constant 0 : i32
    %c0_i32_1 = arith.constant 0 : i32
    return %c0_i32, %c0_i32_0 : i32, i32
  }
}

module attributes {stable_mosaic.version = 11 : i64} {
  func.func @_encoder_layer_kernel(%arg0: i32, %arg1: i32, %arg2: memref<1x16x128xf32, #tpu.memory_space<vmem>>, %arg3: memref<1x16x16xi32, #tpu.memory_space<vmem>>, %arg4: memref<128x384xbf16, #tpu.memory_space<vmem>>, %arg5: memref<1x384xf32, #tpu.memory_space<vmem>>, %arg6: memref<128x128xbf16, #tpu.memory_space<vmem>>, %arg7: memref<1x128xf32, #tpu.memory_space<vmem>>, %arg8: memref<128x256xbf16, #tpu.memory_space<vmem>>, %arg9: memref<1x256xf32, #tpu.memory_space<vmem>>, %arg10: memref<256x128xbf16, #tpu.memory_space<vmem>>, %arg11: memref<1x128xf32, #tpu.memory_space<vmem>>, %arg12: memref<1x16x128xf32, #tpu.memory_space<vmem>>, %arg13: memref<1x4x16x16xbf16, #tpu.memory_space<vmem>>, %arg14: memref<16x128xbf16, #tpu.memory_space<vmem>>, %arg15: memref<16x128xf32, #tpu.memory_space<vmem>>) attributes {dimension_semantics = [#tpu.dimension_semantics<parallel>, #tpu.dimension_semantics<arbitrary>], iteration_bounds = array<i64: 2, 1>, scalar_prefetch = 0 : i64, scratch_operands = 2 : i64, tpu.core_type = #tpu.core_type<tc>, window_params = [{transform_indices = @transform_0, window_bounds = array<i64: 1, 16, 128>}, {transform_indices = @transform_1, window_bounds = array<i64: 1, 16, 16>}, {pipeline_mode = #tpu.pipeline_mode<synchronous>, transform_indices = @transform_2, window_bounds = array<i64: 128, 384>}, {pipeline_mode = #tpu.pipeline_mode<synchronous>, transform_indices = @transform_3, window_bounds = array<i64: 1, 384>}, {pipeline_mode = #tpu.pipeline_mode<synchronous>, transform_indices = @transform_4, window_bounds = array<i64: 128, 128>}, {pipeline_mode = #tpu.pipeline_mode<synchronous>, transform_indices = @transform_5, window_bounds = array<i64: 1, 128>}, {transform_indices = @transform_6, window_bounds = array<i64: 128, 256>}, {transform_indices = @transform_7, window_bounds = array<i64: 1, 256>}, {transform_indices = @transform_8, window_bounds = array<i64: 256, 128>}, {pipeline_mode = #tpu.pipeline_mode<synchronous>, transform_indices = @transform_9, window_bounds = array<i64: 1, 128>}, {transform_indices = @transform_10, window_bounds = array<i64: 1, 16, 128>}, {transform_indices = @transform_11, window_bounds = array<i64: 1, 4, 16, 16>}]} {
    %c0_i32 = arith.constant 0 : i32
    %0 = arith.cmpi eq, %arg1, %c0_i32 : i32
    %1 = arith.extui %0 : i1 to i32
    %c0_i32_0 = arith.constant 0 : i32
    %2 = arith.cmpi ne, %1, %c0_i32_0 : i32
    scf.if %2 {
      %c0_16 = arith.constant 0 : index
      %c0_17 = arith.constant 0 : index
      %c0_18 = arith.constant 0 : index
      %20 = vector.load %arg2[%c0_16, %c0_17, %c0_18] : memref<1x16x128xf32, #tpu.memory_space<vmem>>, vector<1x16x128xf32>
      %21 = vector.shape_cast %20 : vector<1x16x128xf32> to vector<16x128xf32>
      %22 = arith.truncf %21 : vector<16x128xf32> to vector<16x128xbf16>
      %c0_19 = arith.constant 0 : index
      %c0_20 = arith.constant 0 : index
      %c0_21 = arith.constant 0 : index
      %23 = vector.load %arg3[%c0_19, %c0_20, %c0_21] : memref<1x16x16xi32, #tpu.memory_space<vmem>>, vector<1x16x16xi32>
      %24 = vector.shape_cast %23 : vector<1x16x16xi32> to vector<16x16xi32>
      %c0_i32_22 = arith.constant 0 : i32
      %25 = vector.broadcast %c0_i32_22 : i32 to vector<16x16xi32>
      %26 = arith.cmpi ne, %24, %25 : vector<16x16xi32>
      %c0_23 = arith.constant 0 : index
      %c0_24 = arith.constant 0 : index
      %27 = vector.load %arg4[%c0_23, %c0_24] : memref<128x384xbf16, #tpu.memory_space<vmem>>, vector<128x384xbf16>
      %cst_25 = arith.constant dense<0.000000e+00> : vector<16x384xf32>
      %28 = tpu.matmul %22, %27, %cst_25 {dimension_numbers = #tpu.dot_dimension_numbers<[1], [0], [0], [1], [0, 0, 1, 1], [], []>} : vector<16x128xbf16>, vector<128x384xbf16>, vector<16x384xf32> -> vector<16x384xf32>
      %c0_26 = arith.constant 0 : index
      %c0_27 = arith.constant 0 : index
      %29 = vector.load %arg5[%c0_26, %c0_27] : memref<1x384xf32, #tpu.memory_space<vmem>>, vector<1x384xf32>
      %30 = vector.broadcast %29 : vector<1x384xf32> to vector<16x384xf32>
      %31 = arith.addf %28, %30 : vector<16x384xf32>
      %32 = arith.truncf %31 : vector<16x384xf32> to vector<16x384xbf16>
      %33 = vector.extract_strided_slice %32 {offsets = [0, 0], sizes = [16, 32], strides = [1, 1]} : vector<16x384xbf16> to vector<16x32xbf16>
      %34 = vector.extract_strided_slice %32 {offsets = [0, 128], sizes = [16, 32], strides = [1, 1]} : vector<16x384xbf16> to vector<16x32xbf16>
      %35 = vector.extract_strided_slice %32 {offsets = [0, 256], sizes = [16, 32], strides = [1, 1]} : vector<16x384xbf16> to vector<16x32xbf16>
      %cst_28 = arith.constant dense<0.000000e+00> : vector<16x16xf32>
      %36 = tpu.matmul %33, %34, %cst_28 {dimension_numbers = #tpu.dot_dimension_numbers<[1], [1], [0], [0], [0, 0, 1, 0], [], []>} : vector<16x32xbf16>, vector<16x32xbf16>, vector<16x16xf32> -> vector<16x16xf32>
      %cst_29 = arith.constant 0.176776692 : f32
      %37 = vector.broadcast %cst_29 : f32 to vector<16x16xf32>
      %38 = arith.mulf %36, %37 : vector<16x16xf32>
      %cst_30 = arith.constant -1.000000e+09 : f32
      %39 = vector.broadcast %cst_30 : f32 to vector<16x16xf32>
      %40 = arith.select %26, %39, %38 : vector<16x16xi1>, vector<16x16xf32>
      %cst_31 = arith.constant dense<0xFF800000> : vector<16xf32>
      %41 = vector.multi_reduction <maximumf>, %40, %cst_31 [1] : vector<16x16xf32> to vector<16xf32>
      %42 = vector.shape_cast %41 : vector<16xf32> to vector<16x1xf32>
      %43 = vector.broadcast %42 : vector<16x1xf32> to vector<16x16xf32>
      %44 = arith.subf %40, %43 : vector<16x16xf32>
      %45 = math.exp %44 : vector<16x16xf32>
      %cst_32 = arith.constant dense<0.000000e+00> : vector<16xf32>
      %46 = vector.multi_reduction <add>, %45, %cst_32 [1] : vector<16x16xf32> to vector<16xf32>
      %47 = vector.shape_cast %46 : vector<16xf32> to vector<16x1xf32>
      %48 = tpu.reciprocal %47 {approx = true} : vector<16x1xf32> -> vector<16x1xf32>
      %49 = vector.broadcast %48 : vector<16x1xf32> to vector<16x16xf32>
      %50 = arith.mulf %45, %49 : vector<16x16xf32>
      %51 = arith.truncf %50 : vector<16x16xf32> to vector<16x16xbf16>
      %c0_33 = arith.constant 0 : index
      %c0_34 = arith.constant 0 : index
      %c0_35 = arith.constant 0 : index
      %c0_36 = arith.constant 0 : index
      %52 = vector.load %arg13[%c0_33, %c0_34, %c0_35, %c0_36] : memref<1x4x16x16xbf16, #tpu.memory_space<vmem>>, vector<1x1x16x16xbf16>
      %53 = vector.shape_cast %52 : vector<1x1x16x16xbf16> to vector<16x16xbf16>
      %54 = vector.shape_cast %51 : vector<16x16xbf16> to vector<1x1x16x16xbf16>
      tpu.vector_store %arg13[%c0_33, %c0_34, %c0_35, %c0_36], %54 {strides = array<i32>} : memref<1x4x16x16xbf16, #tpu.memory_space<vmem>>, vector<1x1x16x16xbf16>,
      %cst_37 = arith.constant dense<0.000000e+00> : vector<16x32xf32>
      %55 = tpu.matmul %51, %35, %cst_37 {dimension_numbers = #tpu.dot_dimension_numbers<[1], [0], [0], [1], [0, 0, 1, 1], [], []>} : vector<16x16xbf16>, vector<16x32xbf16>, vector<16x32xf32> -> vector<16x32xf32>
      %56 = vector.extract_strided_slice %32 {offsets = [0, 32], sizes = [16, 32], strides = [1, 1]} : vector<16x384xbf16> to vector<16x32xbf16>
      %57 = vector.extract_strided_slice %32 {offsets = [0, 160], sizes = [16, 32], strides = [1, 1]} : vector<16x384xbf16> to vector<16x32xbf16>
      %58 = vector.extract_strided_slice %32 {offsets = [0, 288], sizes = [16, 32], strides = [1, 1]} : vector<16x384xbf16> to vector<16x32xbf16>
      %cst_38 = arith.constant dense<0.000000e+00> : vector<16x16xf32>
      %59 = tpu.matmul %56, %57, %cst_38 {dimension_numbers = #tpu.dot_dimension_numbers<[1], [1], [0], [0], [0, 0, 1, 0], [], []>} : vector<16x32xbf16>, vector<16x32xbf16>, vector<16x16xf32> -> vector<16x16xf32>
      %cst_39 = arith.constant 0.176776692 : f32
      %60 = vector.broadcast %cst_39 : f32 to vector<16x16xf32>
      %61 = arith.mulf %59, %60 : vector<16x16xf32>
      %cst_40 = arith.constant -1.000000e+09 : f32
      %62 = vector.broadcast %cst_40 : f32 to vector<16x16xf32>
      %63 = arith.select %26, %62, %61 : vector<16x16xi1>, vector<16x16xf32>
      %cst_41 = arith.constant dense<0xFF800000> : vector<16xf32>
      %64 = vector.multi_reduction <maximumf>, %63, %cst_41 [1] : vector<16x16xf32> to vector<16xf32>
      %65 = vector.shape_cast %64 : vector<16xf32> to vector<16x1xf32>
      %66 = vector.broadcast %65 : vector<16x1xf32> to vector<16x16xf32>
      %67 = arith.subf %63, %66 : vector<16x16xf32>
      %68 = math.exp %67 : vector<16x16xf32>
      %cst_42 = arith.constant dense<0.000000e+00> : vector<16xf32>
      %69 = vector.multi_reduction <add>, %68, %cst_42 [1] : vector<16x16xf32> to vector<16xf32>
      %70 = vector.shape_cast %69 : vector<16xf32> to vector<16x1xf32>
      %71 = tpu.reciprocal %70 {approx = true} : vector<16x1xf32> -> vector<16x1xf32>
      %72 = vector.broadcast %71 : vector<16x1xf32> to vector<16x16xf32>
      %73 = arith.mulf %68, %72 : vector<16x16xf32>
      %74 = arith.truncf %73 : vector<16x16xf32> to vector<16x16xbf16>
      %c0_43 = arith.constant 0 : index
      %c1 = arith.constant 1 : index
      %c0_44 = arith.constant 0 : index
      %c0_45 = arith.constant 0 : index
      %75 = vector.load %arg13[%c0_43, %c1, %c0_44, %c0_45] : memref<1x4x16x16xbf16, #tpu.memory_space<vmem>>, vector<1x1x16x16xbf16>
      %76 = vector.shape_cast %75 : vector<1x1x16x16xbf16> to vector<16x16xbf16>
      %77 = vector.shape_cast %74 : vector<16x16xbf16> to vector<1x1x16x16xbf16>
      tpu.vector_store %arg13[%c0_43, %c1, %c0_44, %c0_45], %77 {strides = array<i32>} : memref<1x4x16x16xbf16, #tpu.memory_space<vmem>>, vector<1x1x16x16xbf16>,
      %cst_46 = arith.constant dense<0.000000e+00> : vector<16x32xf32>
      %78 = tpu.matmul %74, %58, %cst_46 {dimension_numbers = #tpu.dot_dimension_numbers<[1], [0], [0], [1], [0, 0, 1, 1], [], []>} : vector<16x16xbf16>, vector<16x32xbf16>, vector<16x32xf32> -> vector<16x32xf32>
      %79 = vector.extract_strided_slice %32 {offsets = [0, 64], sizes = [16, 32], strides = [1, 1]} : vector<16x384xbf16> to vector<16x32xbf16>
      %80 = vector.extract_strided_slice %32 {offsets = [0, 192], sizes = [16, 32], strides = [1, 1]} : vector<16x384xbf16> to vector<16x32xbf16>
      %81 = vector.extract_strided_slice %32 {offsets = [0, 320], sizes = [16, 32], strides = [1, 1]} : vector<16x384xbf16> to vector<16x32xbf16>
      %cst_47 = arith.constant dense<0.000000e+00> : vector<16x16xf32>
      %82 = tpu.matmul %79, %80, %cst_47 {dimension_numbers = #tpu.dot_dimension_numbers<[1], [1], [0], [0], [0, 0, 1, 0], [], []>} : vector<16x32xbf16>, vector<16x32xbf16>, vector<16x16xf32> -> vector<16x16xf32>
      %cst_48 = arith.constant 0.176776692 : f32
      %83 = vector.broadcast %cst_48 : f32 to vector<16x16xf32>
      %84 = arith.mulf %82, %83 : vector<16x16xf32>
      %cst_49 = arith.constant -1.000000e+09 : f32
      %85 = vector.broadcast %cst_49 : f32 to vector<16x16xf32>
      %86 = arith.select %26, %85, %84 : vector<16x16xi1>, vector<16x16xf32>
      %cst_50 = arith.constant dense<0xFF800000> : vector<16xf32>
      %87 = vector.multi_reduction <maximumf>, %86, %cst_50 [1] : vector<16x16xf32> to vector<16xf32>
      %88 = vector.shape_cast %87 : vector<16xf32> to vector<16x1xf32>
      %89 = vector.broadcast %88 : vector<16x1xf32> to vector<16x16xf32>
      %90 = arith.subf %86, %89 : vector<16x16xf32>
      %91 = math.exp %90 : vector<16x16xf32>
      %cst_51 = arith.constant dense<0.000000e+00> : vector<16xf32>
      %92 = vector.multi_reduction <add>, %91, %cst_51 [1] : vector<16x16xf32> to vector<16xf32>
      %93 = vector.shape_cast %92 : vector<16xf32> to vector<16x1xf32>
      %94 = tpu.reciprocal %93 {approx = true} : vector<16x1xf32> -> vector<16x1xf32>
      %95 = vector.broadcast %94 : vector<16x1xf32> to vector<16x16xf32>
      %96 = arith.mulf %91, %95 : vector<16x16xf32>
      %97 = arith.truncf %96 : vector<16x16xf32> to vector<16x16xbf16>
      %c0_52 = arith.constant 0 : index
      %c2 = arith.constant 2 : index
      %c0_53 = arith.constant 0 : index
      %c0_54 = arith.constant 0 : index
      %98 = vector.load %arg13[%c0_52, %c2, %c0_53, %c0_54] : memref<1x4x16x16xbf16, #tpu.memory_space<vmem>>, vector<1x1x16x16xbf16>
      %99 = vector.shape_cast %98 : vector<1x1x16x16xbf16> to vector<16x16xbf16>
      %100 = vector.shape_cast %97 : vector<16x16xbf16> to vector<1x1x16x16xbf16>
      tpu.vector_store %arg13[%c0_52, %c2, %c0_53, %c0_54], %100 {strides = array<i32>} : memref<1x4x16x16xbf16, #tpu.memory_space<vmem>>, vector<1x1x16x16xbf16>,
      %cst_55 = arith.constant dense<0.000000e+00> : vector<16x32xf32>
      %101 = tpu.matmul %97, %81, %cst_55 {dimension_numbers = #tpu.dot_dimension_numbers<[1], [0], [0], [1], [0, 0, 1, 1], [], []>} : vector<16x16xbf16>, vector<16x32xbf16>, vector<16x32xf32> -> vector<16x32xf32>
      %102 = vector.extract_strided_slice %32 {offsets = [0, 96], sizes = [16, 32], strides = [1, 1]} : vector<16x384xbf16> to vector<16x32xbf16>
      %103 = vector.extract_strided_slice %32 {offsets = [0, 224], sizes = [16, 32], strides = [1, 1]} : vector<16x384xbf16> to vector<16x32xbf16>
      %104 = vector.extract_strided_slice %32 {offsets = [0, 352], sizes = [16, 32], strides = [1, 1]} : vector<16x384xbf16> to vector<16x32xbf16>
      %cst_56 = arith.constant dense<0.000000e+00> : vector<16x16xf32>
      %105 = tpu.matmul %102, %103, %cst_56 {dimension_numbers = #tpu.dot_dimension_numbers<[1], [1], [0], [0], [0, 0, 1, 0], [], []>} : vector<16x32xbf16>, vector<16x32xbf16>, vector<16x16xf32> -> vector<16x16xf32>
      %cst_57 = arith.constant 0.176776692 : f32
      %106 = vector.broadcast %cst_57 : f32 to vector<16x16xf32>
      %107 = arith.mulf %105, %106 : vector<16x16xf32>
      %cst_58 = arith.constant -1.000000e+09 : f32
      %108 = vector.broadcast %cst_58 : f32 to vector<16x16xf32>
      %109 = arith.select %26, %108, %107 : vector<16x16xi1>, vector<16x16xf32>
      %cst_59 = arith.constant dense<0xFF800000> : vector<16xf32>
      %110 = vector.multi_reduction <maximumf>, %109, %cst_59 [1] : vector<16x16xf32> to vector<16xf32>
      %111 = vector.shape_cast %110 : vector<16xf32> to vector<16x1xf32>
      %112 = vector.broadcast %111 : vector<16x1xf32> to vector<16x16xf32>
      %113 = arith.subf %109, %112 : vector<16x16xf32>
      %114 = math.exp %113 : vector<16x16xf32>
      %cst_60 = arith.constant dense<0.000000e+00> : vector<16xf32>
      %115 = vector.multi_reduction <add>, %114, %cst_60 [1] : vector<16x16xf32> to vector<16xf32>
      %116 = vector.shape_cast %115 : vector<16xf32> to vector<16x1xf32>
      %117 = tpu.reciprocal %116 {approx = true} : vector<16x1xf32> -> vector<16x1xf32>
      %118 = vector.broadcast %117 : vector<16x1xf32> to vector<16x16xf32>
      %119 = arith.mulf %114, %118 : vector<16x16xf32>
      %120 = arith.truncf %119 : vector<16x16xf32> to vector<16x16xbf16>
      %c0_61 = arith.constant 0 : index
      %c3 = arith.constant 3 : index
      %c0_62 = arith.constant 0 : index
      %c0_63 = arith.constant 0 : index
      %121 = vector.load %arg13[%c0_61, %c3, %c0_62, %c0_63] : memref<1x4x16x16xbf16, #tpu.memory_space<vmem>>, vector<1x1x16x16xbf16>
      %122 = vector.shape_cast %121 : vector<1x1x16x16xbf16> to vector<16x16xbf16>
      %123 = vector.shape_cast %120 : vector<16x16xbf16> to vector<1x1x16x16xbf16>
      tpu.vector_store %arg13[%c0_61, %c3, %c0_62, %c0_63], %123 {strides = array<i32>} : memref<1x4x16x16xbf16, #tpu.memory_space<vmem>>, vector<1x1x16x16xbf16>,
      %cst_64 = arith.constant dense<0.000000e+00> : vector<16x32xf32>
      %124 = tpu.matmul %120, %104, %cst_64 {dimension_numbers = #tpu.dot_dimension_numbers<[1], [0], [0], [1], [0, 0, 1, 1], [], []>} : vector<16x16xbf16>, vector<16x32xbf16>, vector<16x32xf32> -> vector<16x32xf32>
      %125 = arith.truncf %55 : vector<16x32xf32> to vector<16x32xbf16>
      %126 = arith.truncf %78 : vector<16x32xf32> to vector<16x32xbf16>
      %127 = arith.truncf %101 : vector<16x32xf32> to vector<16x32xbf16>
      %128 = arith.truncf %124 : vector<16x32xf32> to vector<16x32xbf16>
      %129 = tpu.concatenate %125, %126, %127, %128 in 1 : vector<16x32xbf16>, vector<16x32xbf16>, vector<16x32xbf16>, vector<16x32xbf16> -> vector<16x128xbf16>
      %c0_65 = arith.constant 0 : index
      %c0_66 = arith.constant 0 : index
      %130 = vector.load %arg6[%c0_65, %c0_66] : memref<128x128xbf16, #tpu.memory_space<vmem>>, vector<128x128xbf16>
      %cst_67 = arith.constant dense<0.000000e+00> : vector<16x128xf32>
      %131 = tpu.matmul %129, %130, %cst_67 {dimension_numbers = #tpu.dot_dimension_numbers<[1], [0], [0], [1], [0, 0, 1, 1], [], []>} : vector<16x128xbf16>, vector<128x128xbf16>, vector<16x128xf32> -> vector<16x128xf32>
      %c0_68 = arith.constant 0 : index
      %c0_69 = arith.constant 0 : index
      %132 = vector.load %arg7[%c0_68, %c0_69] : memref<1x128xf32, #tpu.memory_space<vmem>>, vector<1x128xf32>
      %133 = vector.broadcast %132 : vector<1x128xf32> to vector<16x128xf32>
      %134 = arith.addf %131, %133 : vector<16x128xf32>
      %135 = arith.addf %134, %21 : vector<16x128xf32>
      %cst_70 = arith.constant dense<0.000000e+00> : vector<16xf32>
      %136 = vector.multi_reduction <add>, %135, %cst_70 [1] : vector<16x128xf32> to vector<16xf32>
      %137 = vector.shape_cast %136 : vector<16xf32> to vector<16x1xf32>
      %cst_71 = arith.constant 1.280000e+02 : f32
      %138 = vector.broadcast %cst_71 : f32 to vector<16x1xf32>
      %139 = arith.divf %137, %138 : vector<16x1xf32>
      %140 = vector.broadcast %139 : vector<16x1xf32> to vector<16x128xf32>
      %141 = arith.subf %135, %140 : vector<16x128xf32>
      %142 = arith.mulf %141, %141 : vector<16x128xf32>
      %cst_72 = arith.constant dense<0.000000e+00> : vector<16xf32>
      %143 = vector.multi_reduction <add>, %142, %cst_72 [1] : vector<16x128xf32> to vector<16xf32>
      %144 = vector.shape_cast %143 : vector<16xf32> to vector<16x1xf32>
      %cst_73 = arith.constant 1.280000e+02 : f32
      %145 = vector.broadcast %cst_73 : f32 to vector<16x1xf32>
      %146 = arith.divf %144, %145 : vector<16x1xf32>
      %147 = vector.broadcast %139 : vector<16x1xf32> to vector<16x128xf32>
      %148 = arith.subf %135, %147 : vector<16x128xf32>
      %cst_74 = arith.constant 9.99999974E-6 : f32
      %149 = vector.broadcast %cst_74 : f32 to vector<16x1xf32>
      %150 = arith.addf %146, %149 : vector<16x1xf32>
      %151 = math.rsqrt %150 : vector<16x1xf32>
      %152 = vector.broadcast %151 : vector<16x1xf32> to vector<16x128xf32>
      %153 = arith.mulf %148, %152 : vector<16x128xf32>
      %154 = arith.truncf %153 : vector<16x128xf32> to vector<16x128xbf16>
      %c0_75 = arith.constant 0 : index
      %c0_76 = arith.constant 0 : index
      %155 = vector.load %arg14[%c0_75, %c0_76] : memref<16x128xbf16, #tpu.memory_space<vmem>>, vector<16x128xbf16>
      tpu.vector_store %arg14[%c0_75, %c0_76], %154 {strides = array<i32>} : memref<16x128xbf16, #tpu.memory_space<vmem>>, vector<16x128xbf16>,
      %c0_77 = arith.constant 0 : index
      %c0_78 = arith.constant 0 : index
      %156 = vector.load %arg11[%c0_77, %c0_78] : memref<1x128xf32, #tpu.memory_space<vmem>>, vector<1x128xf32>
      %157 = vector.broadcast %156 : vector<1x128xf32> to vector<16x128xf32>
      %158 = arith.addf %153, %157 : vector<16x128xf32>
      %c0_79 = arith.constant 0 : index
      %c0_80 = arith.constant 0 : index
      %159 = vector.load %arg15[%c0_79, %c0_80] : memref<16x128xf32, #tpu.memory_space<vmem>>, vector<16x128xf32>
      tpu.vector_store %arg15[%c0_79, %c0_80], %158 {strides = array<i32>} : memref<16x128xf32, #tpu.memory_space<vmem>>, vector<16x128xf32>,
    } else {
    }
    %c0 = arith.constant 0 : index
    %c0_1 = arith.constant 0 : index
    %3 = vector.load %arg14[%c0, %c0_1] : memref<16x128xbf16, #tpu.memory_space<vmem>>, vector<16x128xbf16>
    %c0_2 = arith.constant 0 : index
    %c0_3 = arith.constant 0 : index
    %4 = vector.load %arg8[%c0_2, %c0_3] : memref<128x256xbf16, #tpu.memory_space<vmem>>, vector<128x256xbf16>
    %cst = arith.constant dense<0.000000e+00> : vector<16x256xf32>
    %5 = tpu.matmul %3, %4, %cst {dimension_numbers = #tpu.dot_dimension_numbers<[1], [0], [0], [1], [0, 0, 1, 1], [], []>} : vector<16x128xbf16>, vector<128x256xbf16>, vector<16x256xf32> -> vector<16x256xf32>
    %c0_4 = arith.constant 0 : index
    %c0_5 = arith.constant 0 : index
    %6 = vector.load %arg9[%c0_4, %c0_5] : memref<1x256xf32, #tpu.memory_space<vmem>>, vector<1x256xf32>
    %7 = vector.broadcast %6 : vector<1x256xf32> to vector<16x256xf32>
    %8 = arith.addf %5, %7 : vector<16x256xf32>
    %cst_6 = arith.constant 0.000000e+00 : f32
    %9 = vector.broadcast %cst_6 : f32 to vector<16x256xf32>
    %10 = arith.maximumf %8, %9 : vector<16x256xf32>
    %c0_7 = arith.constant 0 : index
    %c0_8 = arith.constant 0 : index
    %11 = vector.load %arg15[%c0_7, %c0_8] : memref<16x128xf32, #tpu.memory_space<vmem>>, vector<16x128xf32>
    %12 = arith.truncf %10 : vector<16x256xf32> to vector<16x256xbf16>
    %c0_9 = arith.constant 0 : index
    %c0_10 = arith.constant 0 : index
    %13 = vector.load %arg10[%c0_9, %c0_10] : memref<256x128xbf16, #tpu.memory_space<vmem>>, vector<256x128xbf16>
    %cst_11 = arith.constant dense<0.000000e+00> : vector<16x128xf32>
    %14 = tpu.matmul %12, %13, %cst_11 {dimension_numbers = #tpu.dot_dimension_numbers<[1], [0], [0], [1], [0, 0, 1, 1], [], []>} : vector<16x256xbf16>, vector<256x128xbf16>, vector<16x128xf32> -> vector<16x128xf32>
    %15 = arith.addf %11, %14 : vector<16x128xf32>
    %c0_12 = arith.constant 0 : index
    %c0_13 = arith.constant 0 : index
    %16 = vector.load %arg15[%c0_12, %c0_13] : memref<16x128xf32, #tpu.memory_space<vmem>>, vector<16x128xf32>
    tpu.vector_store %arg15[%c0_12, %c0_13], %15 {strides = array<i32>} : memref<16x128xf32, #tpu.memory_space<vmem>>, vector<16x128xf32>,
    %c0_i32_14 = arith.constant 0 : i32
    %17 = arith.cmpi eq, %arg1, %c0_i32_14 : i32
    %18 = arith.extui %17 : i1 to i32
    %c0_i32_15 = arith.constant 0 : i32
    %19 = arith.cmpi ne, %18, %c0_i32_15 : i32
    scf.if %19 {
      %c0_16 = arith.constant 0 : index
      %c0_17 = arith.constant 0 : index
      %20 = vector.load %arg15[%c0_16, %c0_17] : memref<16x128xf32, #tpu.memory_space<vmem>>, vector<16x128xf32>
      %cst_18 = arith.constant dense<0.000000e+00> : vector<16xf32>
      %21 = vector.multi_reduction <add>, %20, %cst_18 [1] : vector<16x128xf32> to vector<16xf32>
      %22 = vector.shape_cast %21 : vector<16xf32> to vector<16x1xf32>
      %cst_19 = arith.constant 1.280000e+02 : f32
      %23 = vector.broadcast %cst_19 : f32 to vector<16x1xf32>
      %24 = arith.divf %22, %23 : vector<16x1xf32>
      %25 = vector.broadcast %24 : vector<16x1xf32> to vector<16x128xf32>
      %26 = arith.subf %20, %25 : vector<16x128xf32>
      %27 = arith.mulf %26, %26 : vector<16x128xf32>
      %cst_20 = arith.constant dense<0.000000e+00> : vector<16xf32>
      %28 = vector.multi_reduction <add>, %27, %cst_20 [1] : vector<16x128xf32> to vector<16xf32>
      %29 = vector.shape_cast %28 : vector<16xf32> to vector<16x1xf32>
      %cst_21 = arith.constant 1.280000e+02 : f32
      %30 = vector.broadcast %cst_21 : f32 to vector<16x1xf32>
      %31 = arith.divf %29, %30 : vector<16x1xf32>
      %32 = vector.broadcast %24 : vector<16x1xf32> to vector<16x128xf32>
      %33 = arith.subf %20, %32 : vector<16x128xf32>
      %cst_22 = arith.constant 9.99999974E-6 : f32
      %34 = vector.broadcast %cst_22 : f32 to vector<16x1xf32>
      %35 = arith.addf %31, %34 : vector<16x1xf32>
      %36 = math.rsqrt %35 : vector<16x1xf32>
      %37 = vector.broadcast %36 : vector<16x1xf32> to vector<16x128xf32>
      %38 = arith.mulf %33, %37 : vector<16x128xf32>
      %c0_23 = arith.constant 0 : index
      %c0_24 = arith.constant 0 : index
      %c0_25 = arith.constant 0 : index
      %39 = vector.load %arg12[%c0_23, %c0_24, %c0_25] : memref<1x16x128xf32, #tpu.memory_space<vmem>>, vector<1x16x128xf32>
      %40 = vector.shape_cast %39 : vector<1x16x128xf32> to vector<16x128xf32>
      %41 = vector.shape_cast %38 : vector<16x128xf32> to vector<1x16x128xf32>
      tpu.vector_store %arg12[%c0_23, %c0_24, %c0_25], %41 {strides = array<i32>} : memref<1x16x128xf32, #tpu.memory_space<vmem>>, vector<1x16x128xf32>,
    } else {
    }
    return
  }
  func.func @transform_0(%arg0: i32, %arg1: i32) -> (i32, i32, i32) {
    %c0_i32 = arith.constant 0 : i32
    %c0_i32_0 = arith.constant 0 : i32
    %c0_i32_1 = arith.constant 0 : i32
    return %arg0, %c0_i32, %c0_i32_0 : i32, i32, i32
  }
  func.func @transform_1(%arg0: i32, %arg1: i32) -> (i32, i32, i32) {
    %c0_i32 = arith.constant 0 : i32
    %c0_i32_0 = arith.constant 0 : i32
    %c0_i32_1 = arith.constant 0 : i32
    return %arg0, %c0_i32, %c0_i32_0 : i32, i32, i32
  }
  func.func @transform_2(%arg0: i32, %arg1: i32) -> (i32, i32) {
    %c0_i32 = arith.constant 0 : i32
    %c0_i32_0 = arith.constant 0 : i32
    %c0_i32_1 = arith.constant 0 : i32
    return %c0_i32, %c0_i32_0 : i32, i32
  }
  func.func @transform_3(%arg0: i32, %arg1: i32) -> (i32, i32) {
    %c0_i32 = arith.constant 0 : i32
    %c0_i32_0 = arith.constant 0 : i32
    %c0_i32_1 = arith.constant 0 : i32
    return %c0_i32, %c0_i32_0 : i32, i32
  }
  func.func @transform_4(%arg0: i32, %arg1: i32) -> (i32, i32) {
    %c0_i32 = arith.constant 0 : i32
    %c0_i32_0 = arith.constant 0 : i32
    %c0_i32_1 = arith.constant 0 : i32
    return %c0_i32, %c0_i32_0 : i32, i32
  }
  func.func @transform_5(%arg0: i32, %arg1: i32) -> (i32, i32) {
    %c0_i32 = arith.constant 0 : i32
    %c0_i32_0 = arith.constant 0 : i32
    %c0_i32_1 = arith.constant 0 : i32
    return %c0_i32, %c0_i32_0 : i32, i32
  }
  func.func @transform_6(%arg0: i32, %arg1: i32) -> (i32, i32) {
    %c0_i32 = arith.constant 0 : i32
    %c0_i32_0 = arith.constant 0 : i32
    return %c0_i32, %arg1 : i32, i32
  }
  func.func @transform_7(%arg0: i32, %arg1: i32) -> (i32, i32) {
    %c0_i32 = arith.constant 0 : i32
    %c0_i32_0 = arith.constant 0 : i32
    return %c0_i32, %arg1 : i32, i32
  }
  func.func @transform_8(%arg0: i32, %arg1: i32) -> (i32, i32) {
    %c0_i32 = arith.constant 0 : i32
    %c0_i32_0 = arith.constant 0 : i32
    return %arg1, %c0_i32 : i32, i32
  }
  func.func @transform_9(%arg0: i32, %arg1: i32) -> (i32, i32) {
    %c0_i32 = arith.constant 0 : i32
    %c0_i32_0 = arith.constant 0 : i32
    %c0_i32_1 = arith.constant 0 : i32
    return %c0_i32, %c0_i32_0 : i32, i32
  }
  func.func @transform_10(%arg0: i32, %arg1: i32) -> (i32, i32, i32) {
    %c0_i32 = arith.constant 0 : i32
    %c0_i32_0 = arith.constant 0 : i32
    %c0_i32_1 = arith.constant 0 : i32
    return %arg0, %c0_i32, %c0_i32_0 : i32, i32, i32
  }
  func.func @transform_11(%arg0: i32, %arg1: i32) -> (i32, i32, i32, i32) {
    %c0_i32 = arith.constant 0 : i32
    %c0_i32_0 = arith.constant 0 : i32
    %c0_i32_1 = arith.constant 0 : i32
    %c0_i32_2 = arith.constant 0 : i32
    return %arg0, %c0_i32, %c0_i32_0, %c0_i32_1 : i32, i32, i32, i32
  }
}

</mosaic_0001>

<llo_original>
// kernel: tpu_custom_call.1
$region0: #{tpu_custom_call.1}
  #allocation0 [shape = 'u32[]', space=smem, size = 0x4, offset = 0x4, fixed_abs, tag = 'smem constant byte address 0x4 - core index']
  #allocation1 [shape = 'u32[144,128]{1,0:T(1,128)}', space=vmem, size = 0x12000, scoped, tag = 'internal scratch']
  %s0 = inlined_call_operand.hbm [shape: f32[8,128], index: 0, kind: input, shape index: {}]
  %s1 = inlined_call_operand.hbm [shape: f32[8,128], index: 1, kind: output, shape index: {}]
  %s2 = sld [smem:[#allocation0]]
  $region41: #{tpu_custom_call.1} parent=0
    _
  %s4 = ssub.s32 1, %s2
  %s5 = scalar_select 0, %s4, %s2
  $region1: #{tpu_custom_call.1} parent=0
    #allocation2 [shape = 'u8[4096]{0}', space=vmem, size = 0x1000, scoped, tag = 'input window, operand 0, single buffered']
    #allocation3 [shape = 's32[2]{0}', space=sflag, size = 0x8, scoped, tag = 'scoped memory for tpu_custom_call.1']
    #allocation4 [shape = 's32[2]{0}', space=sflag, size = 0x8, scoped, tag = 'scoped memory for tpu_custom_call.1']
    #allocation5 [shape = 'u8[4096]{0}', space=vmem, size = 0x1000, scoped, tag = 'output window, operand 0, single buffered']
    %6 = vsyncpa [#allocation3], 0
    %7 = vsyncpa [#allocation4], 0
    loop: start=0, step=1, limit=4
    $region2: #{tpu_custom_call.1} parent=1 // loop_pre_header
      _
    $region3: #{tpu_custom_call.1} parent=1 // loop_header
      %s9 = sphi 0, %s13
      %p10 = scmp.ge.s32.totalorder %s9, 4
      %s17 = sphi 0, %s17
      %s19 = sphi 0, %s17
      %s20 = sphi 0, %s19
      %s34 = sphi 0, %s20
      %s38 = sphi 0, %s38
      %s40 = sphi 0, %s38
      %s41 = sphi 0, %s40
      %s55 = sphi 0, %s41
    $region4: #{tpu_custom_call.1} parent=1 // loop_header_branch
      %12 = sbr.rel (%p10) target = $region8
    $region5: #{tpu_custom_call.1} parent=1 // loop_body
      %s14 = ssub.s32 %s9, 1
      %s15 = ssub.s32 %s9, 2
      %s16 = sadd.s32 %s9, 1
      %s18 = sadd.s32 %s17, 1
      %p21 = scmp.eq.s32.totalorder %s9, 1
      %p22 = scmp.ne.s32.totalorder %s17, %s19
      %p23 = scmp.eq.s32.totalorder %s9, 0
      %p24 = por %p22, %p23
      %p25 = scmp.ne.s32.totalorder %s17, %s19
      %p26 = scmp.eq.s32.totalorder %s14, 1
      %p27 = por %p25, %p26
      %p28 = scmp.ne.s32.totalorder %s19, %s20
      %p29 = scmp.eq.s32.totalorder %s14, 0
      %p30 = por %p28, %p29
      %p31 = scmp.ne.s32.totalorder %s19, %s20
      %p32 = scmp.eq.s32.totalorder %s15, 1
      %p33 = por %p31, %p32
      %p35 = scmp.ne.s32.totalorder %s20, %s34
      %p36 = scmp.eq.s32.totalorder %s15, 0
      %p37 = por %p35, %p36
      %s39 = sadd.s32 %s38, 1
      %p42 = scmp.eq.s32.totalorder %s9, 1
      %p43 = scmp.ne.s32.totalorder %s38, %s40
      %p44 = scmp.eq.s32.totalorder %s9, 0
      %p45 = por %p43, %p44
      %p46 = scmp.ne.s32.totalorder %s38, %s40
      %p47 = scmp.eq.s32.totalorder %s14, 1
      %p48 = por %p46, %p47
      %p49 = scmp.ne.s32.totalorder %s40, %s41
      %p50 = scmp.eq.s32.totalorder %s14, 0
      %p51 = por %p49, %p50
      %p52 = scmp.ne.s32.totalorder %s40, %s41
      %p53 = scmp.eq.s32.totalorder %s15, 1
      %p54 = por %p52, %p53
      %p56 = scmp.ne.s32.totalorder %s41, %s55
      %p57 = scmp.eq.s32.totalorder %s15, 0
      %p58 = por %p56, %p57
      %p59 = scmp.le.s32.totalorder 1, %s9
      %p60 = scmp.lt.s32.totalorder %s9, 3
      %p61 = pnand %p59, %p60
      %p62 = pneg %p61
      // Predicated region
      $region9: #{tpu_custom_call.1} parent=5 // pred_check
        _
      $region10: #{tpu_custom_call.1} parent=5 // pred_check_branch
        %64 = sbr.rel (%p61) target = $region12
      $region11: #{tpu_custom_call.1} parent=5 // pred_region
        %s65 = ssub.s32 %s9, 1
        // Predicated region
        $region13: #{tpu_custom_call.1} parent=11 // pred_check
          %p66 = pneg %p30
        $region14: #{tpu_custom_call.1} parent=11 // pred_check_branch
          %68 = sbr.rel (%p66) target = $region16
        $region15: #{tpu_custom_call.1} parent=11 // pred_region
          %s70 = ssub.s32 128, 128
          %71 = vsyncadd [#allocation3], %s70
          %s73 = sshll.u32 [#allocation2], 4
          %s74 = int_to_ptr.vmem [resolvable:$true] %s73
          %76 = dma.hbm_to_vmem [thread:$0]  %s0, 128, %s74, [#allocation3]
        $region16: #{tpu_custom_call.1} parent=11 // pred_fallthru
          _
      $region12: #{tpu_custom_call.1} parent=5 // pred_fallthru
        _
      %p77 = scmp.lt.s32.totalorder %s9, 2
      // Predicated region
      $region17: #{tpu_custom_call.1} parent=5 // pred_check
        %p78 = pneg %p77
      $region18: #{tpu_custom_call.1} parent=5 // pred_check_branch
        %80 = sbr.rel (%p78) target = $region20
      $region19: #{tpu_custom_call.1} parent=5 // pred_region
        _
      $region20: #{tpu_custom_call.1} parent=5 // pred_fallthru
        _
      %p81 = scmp.le.s32.totalorder 1, %s9
      %p82 = scmp.lt.s32.totalorder %s9, 3
      %p83 = pnand %p81, %p82
      %p84 = pneg %p83
      // Predicated region
      $region21: #{tpu_custom_call.1} parent=5 // pred_check
        _
      $region22: #{tpu_custom_call.1} parent=5 // pred_check_branch
        %86 = sbr.rel (%p83) target = $region24
      $region23: #{tpu_custom_call.1} parent=5 // pred_region
        %s87 = ssub.s32 %s9, 1
        // Predicated region
        $region25: #{tpu_custom_call.1} parent=23 // pred_check
          %p88 = pneg %p30
        $region26: #{tpu_custom_call.1} parent=23 // pred_check_branch
          %90 = sbr.rel (%p88) target = $region28
        $region27: #{tpu_custom_call.1} parent=23 // pred_region
          %91 = dma.done [#allocation3], 128
        $region28: #{tpu_custom_call.1} parent=23 // pred_fallthru
          _
        %p92 = pneg %p30
        %p93 = pneg %p27
        %p94 = pneg %p51
        %p95 = pneg %p48
        %v96 = vld [vmem:[#allocation2] sm:$0xff]
        %v97 = vadd.f32 %v96, 1.0
        %98 = vst [vmem:[#allocation5] sm:$0xff] %v97
        // Predicated region
        $region29: #{tpu_custom_call.1} parent=23 // pred_check
          %p99 = pneg %p48
        $region30: #{tpu_custom_call.1} parent=23 // pred_check_branch
          %101 = sbr.rel (%p99) target = $region32
        $region31: #{tpu_custom_call.1} parent=23 // pred_region
          %s103 = ssub.s32 128, 128
          %104 = vsyncadd [#allocation4], %s103
          %s106 = sshll.u32 [#allocation5], 4
          %s107 = int_to_ptr.vmem [resolvable:$true] %s106
          %109 = dma.vmem_to_hbm [thread:$0]  %s107, 128, %s1, [#allocation4]
        $region32: #{tpu_custom_call.1} parent=23 // pred_fallthru
          _
        // Predicated region
        $region33: #{tpu_custom_call.1} parent=23 // pred_check
          %p110 = pneg %p48
        $region34: #{tpu_custom_call.1} parent=23 // pred_check_branch
          %112 = sbr.rel (%p110) target = $region36
        $region35: #{tpu_custom_call.1} parent=23 // pred_region
          %113 = dma.done [#allocation4], 128
        $region36: #{tpu_custom_call.1} parent=23 // pred_fallthru
          _
      $region24: #{tpu_custom_call.1} parent=5 // pred_fallthru
        _
      %p114 = scmp.le.s32.totalorder 2, %s9
      // Predicated region
      $region37: #{tpu_custom_call.1} parent=5 // pred_check
        %p115 = pneg %p114
      $region38: #{tpu_custom_call.1} parent=5 // pred_check_branch
        %117 = sbr.rel (%p115) target = $region40
      $region39: #{tpu_custom_call.1} parent=5 // pred_region
        %s118 = ssub.s32 %s9, 2
      $region40: #{tpu_custom_call.1} parent=5 // pred_fallthru
        _
    $region6: #{tpu_custom_call.1} parent=1 // loop_footer
      %s13 = sadd.s32 1, %s9
    $region7: #{tpu_custom_call.1} parent=1 // loop_footer_branch
      %8 = sbr.rel target = $region3
    $region8: #{tpu_custom_call.1} parent=1 // loop_exit
      _
    %119 = vsyncpa [#allocation3], 1
    %s120 = scalar_lea.sflag [#allocation3], 1
    %121 = vsyncpa %s120, 1
    %122 = vsyncpa [#allocation4], 1
    %s123 = scalar_lea.sflag [#allocation4], 1
    %124 = vsyncpa %s123, 1

// kernel: _forward_impl.1
$region0: #{_forward_impl.1}
  #allocation0 [shape = 'u32[]', space=smem, size = 0x4, offset = 0x4, fixed_abs, tag = 'smem constant byte address 0x4 - core index']
  #allocation1 [shape = 'u32[144,128]{1,0:T(1,128)}', space=vmem, size = 0x12000, scoped, tag = 'internal scratch']
  #allocation2 [shape = 'bf16[16,128]{1,0:T(8,128)(2,1)}', space=vmem, size = 0x1000, scoped, tag = 'scratch operand']
  #allocation3 [shape = 'f32[16,128]{1,0:T(8,128)}', space=vmem, size = 0x2000, scoped, tag = 'scratch operand']
  %s0 = inlined_call_operand.hbm [shape: f32[2,16,128], index: 0, kind: input, shape index: {}]
  %s1 = inlined_call_operand.hbm [shape: s32[2,16,16], index: 1, kind: input, shape index: {}]
  %s2 = inlined_call_operand.hbm [shape: bf16[128,384], index: 2, kind: input, shape index: {}]
  %s3 = inlined_call_operand.vmem [shape: f32[1,384], index: 3, kind: input, shape index: {}]
  %s4 = inlined_call_operand.hbm [shape: bf16[128,128], index: 4, kind: input, shape index: {}]
  %s5 = inlined_call_operand.vmem [shape: f32[1,128], index: 5, kind: input, shape index: {}]
  %s6 = inlined_call_operand.hbm [shape: bf16[128,256], index: 6, kind: input, shape index: {}]
  %s7 = inlined_call_operand.vmem [shape: f32[1,256], index: 7, kind: input, shape index: {}]
  %s8 = inlined_call_operand.hbm [shape: bf16[256,128], index: 8, kind: input, shape index: {}]
  %s9 = inlined_call_operand.hbm [shape: f32[1,128], index: 9, kind: input, shape index: {}]
  %s10 = inlined_call_operand.hbm [shape: f32[2,16,128], index: 10, kind: output, shape index: {0}]
  %s11 = inlined_call_operand.hbm [shape: bf16[2,4,16,16], index: 11, kind: output, shape index: {1}]
  %12 = xla_tuple %s10, %s11
  %s13 = sld [smem:[#allocation0]]
  $region117: #{_forward_impl.1} parent=0
    _
  %s15 = ssub.s32 1, %s13
  %s16 = scalar_select 0, %s15, %s13
  $region1: #{_forward_impl.1} parent=0
    #allocation4 [shape = 'u8[16384]{0}', space=vmem, size = 0x4000, scoped, tag = 'input window, operand 0']
    #allocation5 [shape = 's32[2]{0}', space=sflag, size = 0x8, scoped, tag = 'scoped memory for _forward_impl.1']
    #allocation6 [shape = 's32[2]{0}', space=sflag, size = 0x8, scoped, tag = 'scoped memory for _forward_impl.1']
    #allocation7 [shape = 'u8[16384]{0}', space=vmem, size = 0x4000, scoped, tag = 'input window, operand 1']
    #allocation8 [shape = 's32[2]{0}', space=sflag, size = 0x8, scoped, tag = 'scoped memory for _forward_impl.1']
    #allocation9 [shape = 'u8[98304]{0}', space=vmem, size = 0x18000, scoped, tag = 'input window, operand 2, single buffered']
    #allocation10 [shape = 'u8[32768]{0}', space=vmem, size = 0x8000, scoped, tag = 'input window, operand 4, single buffered']
    #allocation11 [shape = 's32[1]{0}', space=sflag, size = 0x4, scoped, tag = 'scoped memory for _forward_impl.1']
    #allocation12 [shape = 'u8[65536]{0}', space=vmem, size = 0x10000, scoped, tag = 'input window, operand 6, single buffered']
    #allocation13 [shape = 'u8[65536]{0}', space=vmem, size = 0x10000, scoped, tag = 'input window, operand 8, single buffered']
    #allocation14 [shape = 's32[1]{0}', space=sflag, size = 0x4, scoped, tag = 'scoped memory for _forward_impl.1']
    #allocation15 [shape = 'u8[512]{0}', space=vmem, size = 0x400, scoped, tag = 'input window, operand 9, single buffered']
    #allocation16 [shape = 'u8[16384]{0}', space=vmem, size = 0x4000, scoped, tag = 'output window, operand 0']
    #allocation17 [shape = 'u8[32768]{0}', space=vmem, size = 0x8000, scoped, tag = 'output window, operand 1']
    #allocation18 [shape = 's32[2]{0}', space=sflag, size = 0x8, scoped, tag = 'scoped memory for _forward_impl.1']
    %17 = vsyncpa [#allocation5], 0
    %s18 = scalar_lea.sflag [#allocation5], 1
    %19 = vsyncpa %s18, 0
    %20 = vsyncpa [#allocation8], 0
    %s21 = scalar_lea.sflag [#allocation8], 1
    %22 = vsyncpa %s21, 0
    %23 = vsyncpa [#allocation11], 0
    %24 = vsyncpa [#allocation14], 0
    %25 = vsyncpa [#allocation6], 0
    %s26 = scalar_lea.sflag [#allocation6], 1
    %27 = vsyncpa %s26, 0
    %28 = vsyncpa [#allocation18], 0
    %s29 = scalar_lea.sflag [#allocation18], 1
    %30 = vsyncpa %s29, 0
    loop: start=0, step=1, limit=4
    $region2: #{_forward_impl.1} parent=1 // loop_pre_header
      _
    $region3: #{_forward_impl.1} parent=1 // loop_header
      %s32 = sphi 0, %s36
      %p33 = scmp.ge.s32.totalorder %s32, 4
      %s39 = sphi 0, %s51
      %s40 = sphi 0, %s47
      %s41 = sphi 0, %s39
      %s42 = sphi 0, %s40
      %s43 = sphi 0, %s41
      %s44 = sphi 0, %s42
      %s54 = sphi 0, %s56
      %s57 = sphi 0, %s54
      %s58 = sphi 0, %s57
      %s74 = sphi 0, %s58
      %s80 = sphi 0, %s82
      %s83 = sphi 0, %s80
      %s84 = sphi 0, %s83
      %s100 = sphi 0, %s84
      %s104 = sphi 0, %s104
      %s106 = sphi 0, %s104
      %s107 = sphi 0, %s106
      %s121 = sphi 0, %s107
      %s125 = sphi 0, %s125
      %s127 = sphi 0, %s125
      %s128 = sphi 0, %s127
      %s142 = sphi 0, %s128
      %s146 = sphi 0, %s146
      %s148 = sphi 0, %s146
      %s149 = sphi 0, %s148
      %s163 = sphi 0, %s149
      %s167 = sphi 0, %s167
      %s169 = sphi 0, %s167
      %s170 = sphi 0, %s169
      %s184 = sphi 0, %s170
      %s190 = sphi 0, %s192
      %s193 = sphi 0, %s190
      %s194 = sphi 0, %s193
      %s210 = sphi 0, %s194
      %s216 = sphi 0, %s218
      %s219 = sphi 0, %s216
      %s220 = sphi 0, %s219
      %s236 = sphi 0, %s220
      %s242 = sphi 0, %s244
      %s245 = sphi 0, %s242
      %s246 = sphi 0, %s245
      %s262 = sphi 0, %s246
      %s266 = sphi 0, %s266
      %s268 = sphi 0, %s266
      %s269 = sphi 0, %s268
      %s283 = sphi 0, %s269
      %s289 = sphi 0, %s291
      %s292 = sphi 0, %s289
      %s293 = sphi 0, %s292
      %s309 = sphi 0, %s293
      %s315 = sphi 0, %s317
      %s318 = sphi 0, %s315
      %s319 = sphi 0, %s318
      %s335 = sphi 0, %s319
    $region4: #{_forward_impl.1} parent=1 // loop_header_branch
      %35 = sbr.rel (%p33) target = $region8
    $region5: #{_forward_impl.1} parent=1 // loop_body
      %s37 = ssub.s32 %s32, 1
      %s38 = ssub.s32 %s32, 2
      %s45 = sadd.s32 1, %s40
      %p46 = scmp.ge.s32.totalorder %s45, 1
      %s47 = scalar_select %p46, 0, %s45
      %s48 = sadd.s32 1, %s39
      %s49 = scalar_select %p46, %s48, %s39
      %p50 = scmp.ge.s32.totalorder %s49, 2
      %s51 = scalar_select %p50, 0, %s49
      %s52 = ssub.s32 %s39, %s51
      %p53 = scmp.eq.s32.totalorder %s52, 0
      %s55 = sadd.s32 %s54, 1
      %s56 = scalar_select %p53, %s54, %s55
      %p59 = pneg %p53
      %p60 = scmp.eq.s32.totalorder %s32, 1
      %p61 = por %p59, %p60
      %p62 = scmp.ne.s32.totalorder %s54, %s57
      %p63 = scmp.eq.s32.totalorder %s32, 0
      %p64 = por %p62, %p63
      %p65 = scmp.ne.s32.totalorder %s54, %s57
      %p66 = scmp.eq.s32.totalorder %s37, 1
      %p67 = por %p65, %p66
      %p68 = scmp.ne.s32.totalorder %s57, %s58
      %p69 = scmp.eq.s32.totalorder %s37, 0
      %p70 = por %p68, %p69
      %p71 = scmp.ne.s32.totalorder %s57, %s58
      %p72 = scmp.eq.s32.totalorder %s38, 1
      %p73 = por %p71, %p72
      %p75 = scmp.ne.s32.totalorder %s58, %s74
      %p76 = scmp.eq.s32.totalorder %s38, 0
      %p77 = por %p75, %p76
      %s78 = ssub.s32 %s39, %s51
      %p79 = scmp.eq.s32.totalorder %s78, 0
      %s81 = sadd.s32 %s80, 1
      %s82 = scalar_select %p79, %s80, %s81
      %p85 = pneg %p79
      %p86 = scmp.eq.s32.totalorder %s32, 1
      %p87 = por %p85, %p86
      %p88 = scmp.ne.s32.totalorder %s80, %s83
      %p89 = scmp.eq.s32.totalorder %s32, 0
      %p90 = por %p88, %p89
      %p91 = scmp.ne.s32.totalorder %s80, %s83
      %p92 = scmp.eq.s32.totalorder %s37, 1
      %p93 = por %p91, %p92
      %p94 = scmp.ne.s32.totalorder %s83, %s84
      %p95 = scmp.eq.s32.totalorder %s37, 0
      %p96 = por %p94, %p95
      %p97 = scmp.ne.s32.totalorder %s83, %s84
      %p98 = scmp.eq.s32.totalorder %s38, 1
      %p99 = por %p97, %p98
      %p101 = scmp.ne.s32.totalorder %s84, %s100
      %p102 = scmp.eq.s32.totalorder %s38, 0
      %p103 = por %p101, %p102
      %s105 = sadd.s32 %s104, 1
      %p108 = scmp.eq.s32.totalorder %s32, 1
      %p109 = scmp.ne.s32.totalorder %s104, %s106
      %p110 = scmp.eq.s32.totalorder %s32, 0
      %p111 = por %p109, %p110
      %p112 = scmp.ne.s32.totalorder %s104, %s106
      %p113 = scmp.eq.s32.totalorder %s37, 1
      %p114 = por %p112, %p113
      %p115 = scmp.ne.s32.totalorder %s106, %s107
      %p116 = scmp.eq.s32.totalorder %s37, 0
      %p117 = por %p115, %p116
      %p118 = scmp.ne.s32.totalorder %s106, %s107
      %p119 = scmp.eq.s32.totalorder %s38, 1
      %p120 = por %p118, %p119
      %p122 = scmp.ne.s32.totalorder %s107, %s121
      %p123 = scmp.eq.s32.totalorder %s38, 0
      %p124 = por %p122, %p123
      %s126 = sadd.s32 %s125, 1
      %p129 = scmp.eq.s32.totalorder %s32, 1
      %p130 = scmp.ne.s32.totalorder %s125, %s127
      %p131 = scmp.eq.s32.totalorder %s32, 0
      %p132 = por %p130, %p131
      %p133 = scmp.ne.s32.totalorder %s125, %s127
      %p134 = scmp.eq.s32.totalorder %s37, 1
      %p135 = por %p133, %p134
      %p136 = scmp.ne.s32.totalorder %s127, %s128
      %p137 = scmp.eq.s32.totalorder %s37, 0
      %p138 = por %p136, %p137
      %p139 = scmp.ne.s32.totalorder %s127, %s128
      %p140 = scmp.eq.s32.totalorder %s38, 1
      %p141 = por %p139, %p140
      %p143 = scmp.ne.s32.totalorder %s128, %s142
      %p144 = scmp.eq.s32.totalorder %s38, 0
      %p145 = por %p143, %p144
      %s147 = sadd.s32 %s146, 1
      %p150 = scmp.eq.s32.totalorder %s32, 1
      %p151 = scmp.ne.s32.totalorder %s146, %s148
      %p152 = scmp.eq.s32.totalorder %s32, 0
      %p153 = por %p151, %p152
      %p154 = scmp.ne.s32.totalorder %s146, %s148
      %p155 = scmp.eq.s32.totalorder %s37, 1
      %p156 = por %p154, %p155
      %p157 = scmp.ne.s32.totalorder %s148, %s149
      %p158 = scmp.eq.s32.totalorder %s37, 0
      %p159 = por %p157, %p158
      %p160 = scmp.ne.s32.totalorder %s148, %s149
      %p161 = scmp.eq.s32.totalorder %s38, 1
      %p162 = por %p160, %p161
      %p164 = scmp.ne.s32.totalorder %s149, %s163
      %p165 = scmp.eq.s32.totalorder %s38, 0
      %p166 = por %p164, %p165
      %s168 = sadd.s32 %s167, 1
      %p171 = scmp.eq.s32.totalorder %s32, 1
      %p172 = scmp.ne.s32.totalorder %s167, %s169
      %p173 = scmp.eq.s32.totalorder %s32, 0
      %p174 = por %p172, %p173
      %p175 = scmp.ne.s32.totalorder %s167, %s169
      %p176 = scmp.eq.s32.totalorder %s37, 1
      %p177 = por %p175, %p176
      %p178 = scmp.ne.s32.totalorder %s169, %s170
      %p179 = scmp.eq.s32.totalorder %s37, 0
      %p180 = por %p178, %p179
      %p181 = scmp.ne.s32.totalorder %s169, %s170
      %p182 = scmp.eq.s32.totalorder %s38, 1
      %p183 = por %p181, %p182
      %p185 = scmp.ne.s32.totalorder %s170, %s184
      %p186 = scmp.eq.s32.totalorder %s38, 0
      %p187 = por %p185, %p186
      %s188 = ssub.s32 %s40, %s47
      %p189 = scmp.eq.s32.totalorder %s188, 0
      %s191 = sadd.s32 %s190, 1
      %s192 = scalar_select %p189, %s190, %s191
      %p195 = pneg %p189
      %p196 = scmp.eq.s32.totalorder %s32, 1
      %p197 = por %p195, %p196
      %p198 = scmp.ne.s32.totalorder %s190, %s193
      %p199 = scmp.eq.s32.totalorder %s32, 0
      %p200 = por %p198, %p199
      %p201 = scmp.ne.s32.totalorder %s190, %s193
      %p202 = scmp.eq.s32.totalorder %s37, 1
      %p203 = por %p201, %p202
      %p204 = scmp.ne.s32.totalorder %s193, %s194
      %p205 = scmp.eq.s32.totalorder %s37, 0
      %p206 = por %p204, %p205
      %p207 = scmp.ne.s32.totalorder %s193, %s194
      %p208 = scmp.eq.s32.totalorder %s38, 1
      %p209 = por %p207, %p208
      %p211 = scmp.ne.s32.totalorder %s194, %s210
      %p212 = scmp.eq.s32.totalorder %s38, 0
      %p213 = por %p211, %p212
      %s214 = ssub.s32 %s40, %s47
      %p215 = scmp.eq.s32.totalorder %s214, 0
      %s217 = sadd.s32 %s216, 1
      %s218 = scalar_select %p215, %s216, %s217
      %p221 = pneg %p215
      %p222 = scmp.eq.s32.totalorder %s32, 1
      %p223 = por %p221, %p222
      %p224 = scmp.ne.s32.totalorder %s216, %s219
      %p225 = scmp.eq.s32.totalorder %s32, 0
      %p226 = por %p224, %p225
      %p227 = scmp.ne.s32.totalorder %s216, %s219
      %p228 = scmp.eq.s32.totalorder %s37, 1
      %p229 = por %p227, %p228
      %p230 = scmp.ne.s32.totalorder %s219, %s220
      %p231 = scmp.eq.s32.totalorder %s37, 0
      %p232 = por %p230, %p231
      %p233 = scmp.ne.s32.totalorder %s219, %s220
      %p234 = scmp.eq.s32.totalorder %s38, 1
      %p235 = por %p233, %p234
      %p237 = scmp.ne.s32.totalorder %s220, %s236
      %p238 = scmp.eq.s32.totalorder %s38, 0
      %p239 = por %p237, %p238
      %s240 = ssub.s32 %s40, %s47
      %p241 = scmp.eq.s32.totalorder %s240, 0
      %s243 = sadd.s32 %s242, 1
      %s244 = scalar_select %p241, %s242, %s243
      %p247 = pneg %p241
      %p248 = scmp.eq.s32.totalorder %s32, 1
      %p249 = por %p247, %p248
      %p250 = scmp.ne.s32.totalorder %s242, %s245
      %p251 = scmp.eq.s32.totalorder %s32, 0
      %p252 = por %p250, %p251
      %p253 = scmp.ne.s32.totalorder %s242, %s245
      %p254 = scmp.eq.s32.totalorder %s37, 1
      %p255 = por %p253, %p254
      %p256 = scmp.ne.s32.totalorder %s245, %s246
      %p257 = scmp.eq.s32.totalorder %s37, 0
      %p258 = por %p256, %p257
      %p259 = scmp.ne.s32.totalorder %s245, %s246
      %p260 = scmp.eq.s32.totalorder %s38, 1
      %p261 = por %p259, %p260
      %p263 = scmp.ne.s32.totalorder %s246, %s262
      %p264 = scmp.eq.s32.totalorder %s38, 0
      %p265 = por %p263, %p264
      %s267 = sadd.s32 %s266, 1
      %p270 = scmp.eq.s32.totalorder %s32, 1
      %p271 = scmp.ne.s32.totalorder %s266, %s268
      %p272 = scmp.eq.s32.totalorder %s32, 0
      %p273 = por %p271, %p272
      %p274 = scmp.ne.s32.totalorder %s266, %s268
      %p275 = scmp.eq.s32.totalorder %s37, 1
      %p276 = por %p274, %p275
      %p277 = scmp.ne.s32.totalorder %s268, %s269
      %p278 = scmp.eq.s32.totalorder %s37, 0
      %p279 = por %p277, %p278
      %p280 = scmp.ne.s32.totalorder %s268, %s269
      %p281 = scmp.eq.s32.totalorder %s38, 1
      %p282 = por %p280, %p281
      %p284 = scmp.ne.s32.totalorder %s269, %s283
      %p285 = scmp.eq.s32.totalorder %s38, 0
      %p286 = por %p284, %p285
      %s287 = ssub.s32 %s39, %s51
      %p288 = scmp.eq.s32.totalorder %s287, 0
      %s290 = sadd.s32 %s289, 1
      %s291 = scalar_select %p288, %s289, %s290
      %p294 = pneg %p288
      %p295 = scmp.eq.s32.totalorder %s32, 1
      %p296 = por %p294, %p295
      %p297 = scmp.ne.s32.totalorder %s289, %s292
      %p298 = scmp.eq.s32.totalorder %s32, 0
      %p299 = por %p297, %p298
      %p300 = scmp.ne.s32.totalorder %s289, %s292
      %p301 = scmp.eq.s32.totalorder %s37, 1
      %p302 = por %p300, %p301
      %p303 = scmp.ne.s32.totalorder %s292, %s293
      %p304 = scmp.eq.s32.totalorder %s37, 0
      %p305 = por %p303, %p304
      %p306 = scmp.ne.s32.totalorder %s292, %s293
      %p307 = scmp.eq.s32.totalorder %s38, 1
      %p308 = por %p306, %p307
      %p310 = scmp.ne.s32.totalorder %s293, %s309
      %p311 = scmp.eq.s32.totalorder %s38, 0
      %p312 = por %p310, %p311
      %s313 = ssub.s32 %s39, %s51
      %p314 = scmp.eq.s32.totalorder %s313, 0
      %s316 = sadd.s32 %s315, 1
      %s317 = scalar_select %p314, %s315, %s316
      %p320 = pneg %p314
      %p321 = scmp.eq.s32.totalorder %s32, 1
      %p322 = por %p320, %p321
      %p323 = scmp.ne.s32.totalorder %s315, %s318
      %p324 = scmp.eq.s32.totalorder %s32, 0
      %p325 = por %p323, %p324
      %p326 = scmp.ne.s32.totalorder %s315, %s318
      %p327 = scmp.eq.s32.totalorder %s37, 1
      %p328 = por %p326, %p327
      %p329 = scmp.ne.s32.totalorder %s318, %s319
      %p330 = scmp.eq.s32.totalorder %s37, 0
      %p331 = por %p329, %p330
      %p332 = scmp.ne.s32.totalorder %s318, %s319
      %p333 = scmp.eq.s32.totalorder %s38, 1
      %p334 = por %p332, %p333
      %p336 = scmp.ne.s32.totalorder %s319, %s335
      %p337 = scmp.eq.s32.totalorder %s38, 0
      %p338 = por %p336, %p337
      %p339 = scmp.le.s32.totalorder 1, %s32
      %p340 = scmp.lt.s32.totalorder %s32, 3
      %p341 = pnand %p339, %p340
      %p342 = pneg %p341
      // Predicated region
      $region9: #{_forward_impl.1} parent=5 // pred_check
        _
      $region10: #{_forward_impl.1} parent=5 // pred_check_branch
        %344 = sbr.rel (%p341) target = $region12
      $region11: #{_forward_impl.1} parent=5 // pred_region
        %s345 = ssub.s32 %s32, 1
        // Predicated region
        $region13: #{_forward_impl.1} parent=11 // pred_check
          %p346 = pneg %p117
        $region14: #{_forward_impl.1} parent=11 // pred_check_branch
          %348 = sbr.rel (%p346) target = $region16
        $region15: #{_forward_impl.1} parent=11 // pred_region
          %s350 = ssub.s32 3072, 3072
          %351 = vsyncadd [#allocation8], %s350
          %s352 = sshll.u32 [#allocation9], 4
          %s353 = int_to_ptr.vmem [resolvable:$true] %s352
          %358 = dma.hbm_to_vmem [thread:$0]  %s2, 3072, %s353, [#allocation8], 192, 192, 12
        $region16: #{_forward_impl.1} parent=11 // pred_fallthru
          _
        // Predicated region
        $region17: #{_forward_impl.1} parent=11 // pred_check
          %p359 = pneg %p138
        $region18: #{_forward_impl.1} parent=11 // pred_check_branch
          %361 = sbr.rel (%p359) target = $region20
        $region19: #{_forward_impl.1} parent=11 // pred_region
          _
        $region20: #{_forward_impl.1} parent=11 // pred_fallthru
          _
        // Predicated region
        $region21: #{_forward_impl.1} parent=11 // pred_check
          %p362 = pneg %p159
        $region22: #{_forward_impl.1} parent=11 // pred_check_branch
          %364 = sbr.rel (%p362) target = $region24
        $region23: #{_forward_impl.1} parent=11 // pred_region
          %s366 = ssub.s32 1024, 1024
          %367 = vsyncadd [#allocation11], %s366
          %s368 = sshll.u32 [#allocation10], 4
          %s369 = int_to_ptr.vmem [resolvable:$true] %s368
          %374 = dma.hbm_to_vmem [thread:$0]  %s4, 1024, %s369, [#allocation11], 64, 64, 4
        $region24: #{_forward_impl.1} parent=11 // pred_fallthru
          _
        // Predicated region
        $region25: #{_forward_impl.1} parent=11 // pred_check
          %p375 = pneg %p180
        $region26: #{_forward_impl.1} parent=11 // pred_check_branch
          %377 = sbr.rel (%p375) target = $region28
        $region27: #{_forward_impl.1} parent=11 // pred_region
          _
        $region28: #{_forward_impl.1} parent=11 // pred_fallthru
          _
        // Predicated region
        $region29: #{_forward_impl.1} parent=11 // pred_check
          %p378 = pneg %p206
        $region30: #{_forward_impl.1} parent=11 // pred_check_branch
          %380 = sbr.rel (%p378) target = $region32
        $region31: #{_forward_impl.1} parent=11 // pred_region
          %s381 = smul.u32 2, %s42
          %s383 = ssub.s32 2048, 2048
          %384 = vsyncadd [#allocation11], %s383
          %s385 = smul.addr %s381, 64
          %s386 = scalar_lea.hbm %s6, %s385
          %s387 = sshll.u32 [#allocation12], 4
          %s388 = int_to_ptr.vmem [resolvable:$true] %s387
          %393 = dma.hbm_to_vmem [thread:$0]  %s386, 2048, %s388, [#allocation11], 128, 128, 8
        $region32: #{_forward_impl.1} parent=11 // pred_fallthru
          _
        // Predicated region
        $region33: #{_forward_impl.1} parent=11 // pred_check
          %p394 = pneg %p232
        $region34: #{_forward_impl.1} parent=11 // pred_check_branch
          %396 = sbr.rel (%p394) target = $region36
        $region35: #{_forward_impl.1} parent=11 // pred_region
          %s397 = smul.u32 2, %s42
          %p398 = scmp.lt.s32.totalorder %s397, 1
          %s399 = scalar_select %p398, %s397, 1
          %s400 = scalar_lea.vmem %s7, %s399
          %s401 = smul.u32 2, %s42
        $region36: #{_forward_impl.1} parent=11 // pred_fallthru
          _
        // Predicated region
        $region37: #{_forward_impl.1} parent=11 // pred_check
          %p402 = pneg %p258
        $region38: #{_forward_impl.1} parent=11 // pred_check_branch
          %404 = sbr.rel (%p402) target = $region40
        $region39: #{_forward_impl.1} parent=11 // pred_region
          %s405 = smul.u32 32, %s42
          %s407 = ssub.s32 2048, 2048
          %408 = vsyncadd [#allocation14], %s407
          %s409 = smul.addr %s405, 64
          %s410 = scalar_lea.hbm %s8, %s409
          %s411 = sshll.u32 [#allocation13], 4
          %s412 = int_to_ptr.vmem [resolvable:$true] %s411
          %417 = dma.hbm_to_vmem [thread:$0]  %s410, 2048, %s412, [#allocation14], 64, 64, 4
        $region40: #{_forward_impl.1} parent=11 // pred_fallthru
          _
        // Predicated region
        $region41: #{_forward_impl.1} parent=11 // pred_check
          %p418 = pneg %p279
        $region42: #{_forward_impl.1} parent=11 // pred_check_branch
          %420 = sbr.rel (%p418) target = $region44
        $region43: #{_forward_impl.1} parent=11 // pred_region
          %s422 = ssub.s32 16, 16
          %423 = vsyncadd [#allocation14], %s422
          %s425 = sshll.u32 [#allocation15], 4
          %s426 = int_to_ptr.vmem [resolvable:$true] %s425
          %428 = dma.hbm_to_vmem [thread:$0]  %s9, 16, %s426, [#allocation14]
        $region44: #{_forward_impl.1} parent=11 // pred_fallthru
          _
      $region12: #{_forward_impl.1} parent=5 // pred_fallthru
        _
      %p429 = scmp.lt.s32.totalorder %s32, 2
      // Predicated region
      $region45: #{_forward_impl.1} parent=5 // pred_check
        %p430 = pneg %p429
      $region46: #{_forward_impl.1} parent=5 // pred_check_branch
        %432 = sbr.rel (%p430) target = $region48
      $region47: #{_forward_impl.1} parent=5 // pred_region
        // Predicated region
        $region49: #{_forward_impl.1} parent=47 // pred_check
          %p433 = pneg %p64
        $region50: #{_forward_impl.1} parent=47 // pred_check_branch
          %435 = sbr.rel (%p433) target = $region52
        $region51: #{_forward_impl.1} parent=47 // pred_region
          %s436 = sand.u32 %s54, 1
          %s437 = scalar_lea.sflag [#allocation5], %s436
          %s438 = sand.u32 %s54, 1
          %s439 = smul.addr %s438, 16
          %s440 = scalar_lea.vmem [#allocation4], %s439
          %s442 = ssub.s32 256, 256
          %443 = vsyncadd %s437, %s442
          %s444 = smul.addr %s39, 2
          %s445 = smul.addr %s444, 128
          %s446 = scalar_lea.hbm %s0, %s445
          %s447 = sshll.u32 %s440, 4
          %s448 = int_to_ptr.vmem [resolvable:$true] %s447
          %453 = dma.hbm_to_vmem [thread:$0]  %s446, 256, %s448, %s437, 128, 128, 8
        $region52: #{_forward_impl.1} parent=47 // pred_fallthru
          _
        // Predicated region
        $region53: #{_forward_impl.1} parent=47 // pred_check
          %p454 = pneg %p90
        $region54: #{_forward_impl.1} parent=47 // pred_check_branch
          %456 = sbr.rel (%p454) target = $region56
        $region55: #{_forward_impl.1} parent=47 // pred_region
          %s457 = sand.u32 %s32, 1
          %s458 = scalar_lea.sflag [#allocation8], %s457
          %s459 = sand.u32 %s80, 1
          %s460 = smul.addr %s459, 16
          %s461 = scalar_lea.vmem [#allocation7], %s460
          %s463 = ssub.s32 256, 256
          %464 = vsyncadd %s458, %s463
          %s465 = smul.addr %s39, 2
          %s466 = smul.addr %s465, 128
          %s467 = scalar_lea.hbm %s1, %s466
          %s468 = sshll.u32 %s461, 4
          %s469 = int_to_ptr.vmem [resolvable:$true] %s468
          %474 = dma.hbm_to_vmem [thread:$0]  %s467, 256, %s469, %s458, 128, 128, 8
        $region56: #{_forward_impl.1} parent=47 // pred_fallthru
          _
      $region48: #{_forward_impl.1} parent=5 // pred_fallthru
        _
      %p475 = scmp.le.s32.totalorder 1, %s32
      %p476 = scmp.lt.s32.totalorder %s32, 3
      %p477 = pnand %p475, %p476
      %p478 = pneg %p477
      // Predicated region
      $region57: #{_forward_impl.1} parent=5 // pred_check
        _
      $region58: #{_forward_impl.1} parent=5 // pred_check_branch
        %480 = sbr.rel (%p477) target = $region60
      $region59: #{_forward_impl.1} parent=5 // pred_region
        %s481 = ssub.s32 %s32, 1
        %s482 = sand.u32 %s57, 1
        %s483 = scalar_lea.sflag [#allocation5], %s482
        %s484 = sand.u32 %s57, 1
        %s485 = smul.addr %s484, 16
        %s486 = scalar_lea.vmem [#allocation4], %s485
        // Predicated region
        $region61: #{_forward_impl.1} parent=59 // pred_check
          %p487 = pneg %p70
        $region62: #{_forward_impl.1} parent=59 // pred_check_branch
          %489 = sbr.rel (%p487) target = $region64
        $region63: #{_forward_impl.1} parent=59 // pred_region
          %490 = dma.done %s483, 256
        $region64: #{_forward_impl.1} parent=59 // pred_fallthru
          _
        %s491 = sand.u32 %s37, 1
        %s492 = scalar_lea.sflag [#allocation8], %s491
        %s493 = sand.u32 %s83, 1
        %s494 = smul.addr %s493, 16
        %s495 = scalar_lea.vmem [#allocation7], %s494
        // Predicated region
        $region65: #{_forward_impl.1} parent=59 // pred_check
          %p496 = pneg %p96
        $region66: #{_forward_impl.1} parent=59 // pred_check_branch
          %498 = sbr.rel (%p496) target = $region68
        $region67: #{_forward_impl.1} parent=59 // pred_region
          %499 = dma.done %s492, 256
        $region68: #{_forward_impl.1} parent=59 // pred_fallthru
          _
        // Predicated region
        $region69: #{_forward_impl.1} parent=59 // pred_check
          %p500 = pneg %p117
        $region70: #{_forward_impl.1} parent=59 // pred_check_branch
          %502 = sbr.rel (%p500) target = $region72
        $region71: #{_forward_impl.1} parent=59 // pred_region
          %503 = dma.done [#allocation8], 3072
        $region72: #{_forward_impl.1} parent=59 // pred_fallthru
          _
        // Predicated region
        $region73: #{_forward_impl.1} parent=59 // pred_check
          %p504 = pneg %p159
        $region74: #{_forward_impl.1} parent=59 // pred_check_branch
          %506 = sbr.rel (%p504) target = $region76
        $region75: #{_forward_impl.1} parent=59 // pred_region
          %507 = dma.done [#allocation11], 1024
        $region76: #{_forward_impl.1} parent=59 // pred_fallthru
          _
        // Predicated region
        $region77: #{_forward_impl.1} parent=59 // pred_check
          %p508 = pneg %p206
        $region78: #{_forward_impl.1} parent=59 // pred_check_branch
          %510 = sbr.rel (%p508) target = $region80
        $region79: #{_forward_impl.1} parent=59 // pred_region
          %511 = dma.done [#allocation11], 2048
        $region80: #{_forward_impl.1} parent=59 // pred_fallthru
          _
        // Predicated region
        $region81: #{_forward_impl.1} parent=59 // pred_check
          %p512 = pneg %p258
        $region82: #{_forward_impl.1} parent=59 // pred_check_branch
          %514 = sbr.rel (%p512) target = $region84
        $region83: #{_forward_impl.1} parent=59 // pred_region
          %515 = dma.done [#allocation14], 2048
        $region84: #{_forward_impl.1} parent=59 // pred_fallthru
          _
        // Predicated region
        $region85: #{_forward_impl.1} parent=59 // pred_check
          %p516 = pneg %p279
        $region86: #{_forward_impl.1} parent=59 // pred_check_branch
          %518 = sbr.rel (%p516) target = $region88
        $region87: #{_forward_impl.1} parent=59 // pred_region
          %519 = dma.done [#allocation14], 16
        $region88: #{_forward_impl.1} parent=59 // pred_fallthru
          _
        %s520 = sand.u32 %s57, 1
        %s521 = scalar_lea.sflag [#allocation5], %s520
        %s522 = sand.u32 %s57, 1
        %s523 = smul.addr %s522, 16
        %s524 = scalar_lea.vmem [#allocation4], %s523
        %p525 = pneg %p70
        %p526 = pneg %p67
        %s527 = sand.u32 %s37, 1
        %s528 = scalar_lea.sflag [#allocation8], %s527
        %s529 = sand.u32 %s83, 1
        %s530 = smul.addr %s529, 16
        %s531 = scalar_lea.vmem [#allocation7], %s530
        %p532 = pneg %p96
        %p533 = pneg %p93
        %p534 = pneg %p117
        %p535 = pneg %p114
        %p536 = pneg %p138
        %p537 = pneg %p135
        %p538 = pneg %p159
        %p539 = pneg %p156
        %p540 = pneg %p180
        %p541 = pneg %p177
        %p542 = pneg %p206
        %p543 = pneg %p203
        %s544 = smul.u32 2, %s42
        %p545 = scmp.lt.s32.totalorder %s544, 1
        %s546 = scalar_select %p545, %s544, 1
        %s547 = scalar_lea.vmem %s7, %s546
        %p548 = pneg %p232
        %p549 = pneg %p229
        %p550 = pneg %p258
        %p551 = pneg %p255
        %p552 = pneg %p279
        %p553 = pneg %p276
        %p554 = pneg %p305
        %p555 = pneg %p302
        %s556 = sand.u32 %s292, 1
        %s557 = scalar_lea.sflag [#allocation6], %s556
        %s558 = sand.u32 %s292, 1
        %s559 = smul.addr %s558, 16
        %s560 = scalar_lea.vmem [#allocation16], %s559
        %p561 = pneg %p331
        %p562 = pneg %p328
        %s563 = sand.u32 %s318, 1
        %s564 = scalar_lea.sflag [#allocation18], %s563
        %s565 = sand.u32 %s318, 1
        %s566 = smul.addr %s565, 32
        %s567 = scalar_lea.vmem [#allocation17], %s566
        %s568 = smul.u32 2, %s42
        %s569 = smul.u32 2, %s42
        %p570 = scmp.lt.s32.totalorder %s569, 1
        %s571 = scalar_select %p570, %s569, 1
        %s572 = scalar_lea.vmem %s7, %s571
        %s573 = smul.u32 2, %s42
        %s574 = smul.u32 32, %s42
        %p576 = scmp.eq.s32.totalorder %s42, 0
        // Predicated region
        $region89: #{_forward_impl.1} parent=59 // pred_check
          %p577 = pneg %p576
        $region90: #{_forward_impl.1} parent=59 // pred_check_branch
          %579 = sbr.rel (%p577) target = $region92
        $region91: #{_forward_impl.1} parent=59 // pred_region
          %v580 = vld [vmem:[%s486] sm:$0xff]
          %v581 = vld [vmem:[%s486 + $0x8] sm:$0xff]
          %v582 = vpack.c.bf16 %v581, %v580
          %v583 = vld [vmem:[%s495] sm:$0xff]
          %v584 = vld [vmem:[%s495 + $0x8] sm:$0xff]
          %vm585 = vcmp.ne.s32.totalorder %v583, 0
          %vm586 = vcmp.ne.s32.totalorder %v584, 0
          %v587 = vld [vmem:[#allocation9] sm:$0xff]
          %v588 = vld [vmem:[#allocation9 + $0x8] sm:$0xf]
          %v589 = vld [vmem:[#allocation9 + $0xc] sm:$0xff]
          %v590 = vld [vmem:[#allocation9 + $0x14] sm:$0xf]
          %v591 = vld [vmem:[#allocation9 + $0x18] sm:$0xff]
          %v592 = vld [vmem:[#allocation9 + $0x20] sm:$0xf]
          %v593 = vld [vmem:[#allocation9 + $0x24] sm:$0xff]
          %v594 = vld [vmem:[#allocation9 + $0x2c] sm:$0xf]
          %v595 = vld [vmem:[#allocation9 + $0x30] sm:$0xff]
          %v596 = vld [vmem:[#allocation9 + $0x38] sm:$0xf]
          %v597 = vld [vmem:[#allocation9 + $0x3c] sm:$0xff]
          %v598 = vld [vmem:[#allocation9 + $0x44] sm:$0xf]
          %v599 = vld [vmem:[#allocation9 + $0x48] sm:$0xff]
          %v600 = vld [vmem:[#allocation9 + $0x50] sm:$0xf]
          %v601 = vld [vmem:[#allocation9 + $0x54] sm:$0xff]
          %v602 = vld [vmem:[#allocation9 + $0x5c] sm:$0xf]
          %v603 = vld [vmem:[#allocation9 + $0x60] sm:$0xff]
          %v604 = vld [vmem:[#allocation9 + $0x68] sm:$0xf]
          %v605 = vld [vmem:[#allocation9 + $0x6c] sm:$0xff]
          %v606 = vld [vmem:[#allocation9 + $0x74] sm:$0xf]
          %v607 = vld [vmem:[#allocation9 + $0x78] sm:$0xff]
          %v608 = vld [vmem:[#allocation9 + $0x80] sm:$0xf]
          %v609 = vld [vmem:[#allocation9 + $0x84] sm:$0xff]
          %v610 = vld [vmem:[#allocation9 + $0x8c] sm:$0xf]
          %v611 = vld [vmem:[#allocation9 + $0x90] sm:$0xff]
          %v612 = vld [vmem:[#allocation9 + $0x98] sm:$0xf]
          %v613 = vld [vmem:[#allocation9 + $0x9c] sm:$0xff]
          %v614 = vld [vmem:[#allocation9 + $0xa4] sm:$0xf]
          %v615 = vld [vmem:[#allocation9 + $0xa8] sm:$0xff]
          %v616 = vld [vmem:[#allocation9 + $0xb0] sm:$0xf]
          %v617 = vld [vmem:[#allocation9 + $0xb4] sm:$0xff]
          %v618 = vld [vmem:[#allocation9 + $0xbc] sm:$0xf]
          %v619 = vld [vmem:[%s3] sm:$0x7]
          %v621 = vlaneseq
          %v622 = vshrl.u32 %v621, 7
          %v623 = vsub.s32 0, %v622
          %v624 = vrot.slane %v619, %v623
          %v625 = vlaneseq
          %v626 = vshrl.u32 %v625, 7
          %v627 = vsub.s32 1, %v626
          %v628 = vrot.slane %v619, %v627
          %v629 = vlaneseq
          %v630 = vshrl.u32 %v629, 7
          %v631 = vsub.s32 2, %v630
          %v632 = vrot.slane %v619, %v631
          %v668 = vunpack.c.l.b16 %v587
          %v669 = vunpack.c.h.b16 %v587
          %v670 = vunpack.c.l.b16 %v588
          %v671 = vunpack.c.l.b16 %v589
          %v672 = vunpack.c.h.b16 %v589
          %v673 = vunpack.c.l.b16 %v590
          %v674 = vunpack.c.l.b16 %v591
          %v675 = vunpack.c.h.b16 %v591
          %v676 = vunpack.c.l.b16 %v592
          %v677 = vunpack.c.l.b16 %v593
          %v678 = vunpack.c.h.b16 %v593
          %v679 = vunpack.c.l.b16 %v594
          %v680 = vunpack.c.l.b16 %v595
          %v681 = vunpack.c.h.b16 %v595
          %v682 = vunpack.c.l.b16 %v596
          %v683 = vunpack.c.l.b16 %v597
          %v684 = vunpack.c.h.b16 %v597
          %v685 = vunpack.c.l.b16 %v598
          %v686 = vunpack.c.l.b16 %v599
          %v687 = vunpack.c.h.b16 %v599
          %v688 = vunpack.c.l.b16 %v600
          %v689 = vunpack.c.l.b16 %v601
          %v690 = vunpack.c.h.b16 %v601
          %v691 = vunpack.c.l.b16 %v602
          %v692 = vunpack.c.l.b16 %v603
          %v693 = vunpack.c.h.b16 %v603
          %v694 = vunpack.c.l.b16 %v604
          %v695 = vunpack.c.l.b16 %v605
          %v696 = vunpack.c.h.b16 %v605
          %v697 = vunpack.c.l.b16 %v606
          %v698 = vunpack.c.l.b16 %v607
          %v699 = vunpack.c.h.b16 %v607
          %v700 = vunpack.c.l.b16 %v608
          %v701 = vunpack.c.l.b16 %v609
          %v702 = vunpack.c.h.b16 %v609
          %v703 = vunpack.c.l.b16 %v610
          %v704 = vunpack.c.l.b16 %v611
          %v705 = vunpack.c.h.b16 %v611
          %v706 = vunpack.c.l.b16 %v612
          %v707 = vunpack.c.l.b16 %v613
          %v708 = vunpack.c.h.b16 %v613
          %v709 = vunpack.c.l.b16 %v614
          %v710 = vunpack.c.l.b16 %v615
          %v711 = vunpack.c.h.b16 %v615
          %v712 = vunpack.c.l.b16 %v616
          %v713 = vunpack.c.l.b16 %v617
          %v714 = vunpack.c.h.b16 %v617
          %v715 = vunpack.c.l.b16 %v618
          %v716 = vpack.c.b16 %v671, %v668
          %v717 = vpack.c.b16 %v672, %v669
          %v718 = vpack.c.b16 %v673, %v670
          %v719 = vpack.c.b16 %v677, %v674
          %v720 = vpack.c.b16 %v678, %v675
          %v721 = vpack.c.b16 %v679, %v676
          %v722 = vpack.c.b16 %v683, %v680
          %v723 = vpack.c.b16 %v684, %v681
          %v724 = vpack.c.b16 %v685, %v682
          %v725 = vpack.c.b16 %v689, %v686
          %v726 = vpack.c.b16 %v690, %v687
          %v727 = vpack.c.b16 %v691, %v688
          %v728 = vpack.c.b16 %v695, %v692
          %v729 = vpack.c.b16 %v696, %v693
          %v730 = vpack.c.b16 %v697, %v694
          %v731 = vpack.c.b16 %v701, %v698
          %v732 = vpack.c.b16 %v702, %v699
          %v733 = vpack.c.b16 %v703, %v700
          %v734 = vpack.c.b16 %v707, %v704
          %v735 = vpack.c.b16 %v708, %v705
          %v736 = vpack.c.b16 %v709, %v706
          %v737 = vpack.c.b16 %v713, %v710
          %v738 = vpack.c.b16 %v714, %v711
          %v739 = vpack.c.b16 %v715, %v712
          %764 = vmatprep.subr.bf16.mxu0 %v738
          %765 = vmatpush1.bf16.msra.mxu0 %v737
          %766 = vmatprep.subr.bf16.mxu0 %v735
          %767 = vmatpush1.bf16.msra.mxu0 %v734
          %768 = vmatprep.subr.bf16.mxu0 %v732
          %769 = vmatpush1.bf16.msra.mxu0 %v731
          %770 = vmatprep.subr.bf16.mxu0 %v729
          %771 = vmatpush1.bf16.msra.mxu0 %v728
          %772 = vmatprep.subr.bf16.mxu0 %v726
          %773 = vmatpush1.bf16.msra.mxu0 %v725
          %774 = vmatprep.subr.bf16.mxu0 %v723
          %775 = vmatpush1.bf16.msra.mxu0 %v722
          %776 = vmatprep.subr.bf16.mxu0 %v720
          %777 = vmatpush1.bf16.msra.mxu0 %v719
          %778 = vmatprep.subr.bf16.mxu0 %v717
          %779 = vmatpush1.bf16.msra.mxu0 %v716
          %780 = vmatprep.subr.bf16.mxu0 0
          %781 = vmatpush2.bf16.msra.mxu0 0
          %782 = vmatprep.subr.bf16.mxu0 0
          %783 = vmatpush2.bf16.msra.mxu0 0
          %784 = vmatprep.subr.bf16.mxu0 0
          %785 = vmatpush2.bf16.msra.mxu0 0
          %786 = vmatprep.subr.bf16.mxu0 0
          %787 = vmatpush2.bf16.msra.mxu0 0
          %788 = vmatprep.subr.bf16.mxu0 0
          %789 = vmatpush2.bf16.msra.mxu0 0
          %790 = vmatprep.subr.bf16.mxu0 0
          %791 = vmatpush2.bf16.msra.mxu0 0
          %792 = vmatprep.subr.bf16.mxu0 0
          %793 = vmatpush2.bf16.msra.mxu0 0
          %794 = vmatprep.subr.bf16.mxu0 0
          %795 = vmatpush2.bf16.msra.mxu0 0
          %796 = vmatprep.mubr.bf16.mxu0 0
          %797 = vmatmul.mubr.bf16.gmra.mxu0 %v582
          %v798 = vpop.f32.mrf.mxu0
          %v799 = vadd.f32 %v624, %v798
          %v800 = vpop.f32.mrf.mxu0
          %v801 = vadd.f32 %v628, %v800
          %v802 = vpop.f32.mrf.mxu0
          %v803 = vadd.f32 %v624, %v802
          %v804 = vpop.f32.mrf.mxu0
          %v805 = vadd.f32 %v628, %v804
          %806 = vdwg.mxu0
          %807 = vmatprep.subr.bf16.mxu0 0
          %808 = vmatpush1.bf16.msra.mxu0 %v739
          %809 = vmatprep.subr.bf16.mxu0 0
          %810 = vmatpush1.bf16.msra.mxu0 %v736
          %811 = vmatprep.subr.bf16.mxu0 0
          %812 = vmatpush1.bf16.msra.mxu0 %v733
          %813 = vmatprep.subr.bf16.mxu0 0
          %814 = vmatpush1.bf16.msra.mxu0 %v730
          %815 = vmatprep.subr.bf16.mxu0 0
          %816 = vmatpush1.bf16.msra.mxu0 %v727
          %817 = vmatprep.subr.bf16.mxu0 0
          %818 = vmatpush1.bf16.msra.mxu0 %v724
          %819 = vmatprep.subr.bf16.mxu0 0
          %820 = vmatpush1.bf16.msra.mxu0 %v721
          %821 = vmatprep.subr.bf16.mxu0 0
          %822 = vmatpush1.bf16.msra.mxu0 %v718
          %823 = vmatprep.subr.bf16.mxu0 0
          %824 = vmatpush2.bf16.msra.mxu0 0
          %825 = vmatprep.subr.bf16.mxu0 0
          %826 = vmatpush2.bf16.msra.mxu0 0
          %827 = vmatprep.subr.bf16.mxu0 0
          %828 = vmatpush2.bf16.msra.mxu0 0
          %829 = vmatprep.subr.bf16.mxu0 0
          %830 = vmatpush2.bf16.msra.mxu0 0
          %831 = vmatprep.subr.bf16.mxu0 0
          %832 = vmatpush2.bf16.msra.mxu0 0
          %833 = vmatprep.subr.bf16.mxu0 0
          %834 = vmatpush2.bf16.msra.mxu0 0
          %835 = vmatprep.subr.bf16.mxu0 0
          %836 = vmatpush2.bf16.msra.mxu0 0
          %837 = vmatprep.subr.bf16.mxu0 0
          %838 = vmatpush2.bf16.msra.mxu0 0
          %839 = vmatprep.mubr.bf16.mxu0 0
          %840 = vmatmul.mubr.bf16.gmra.mxu0 %v582
          %v841 = vpop.f32.mrf.mxu0
          %v842 = vadd.f32 %v632, %v841
          %v843 = vpop.f32.mrf.mxu0
          %v844 = vpop.f32.mrf.mxu0
          %v845 = vadd.f32 %v632, %v844
          %v846 = vpop.f32.mrf.mxu0
          %847 = vdwg.mxu0
          %v848 = vpack.c.bf16 %v803, %v799
          %v849 = vpack.c.bf16 %v805, %v801
          %v850 = vpack.c.bf16 %v845, %v842
          %vm851 = vcmask 261120
          %v853 = vsel %vm851, %v848, 0
          %v856 = vsel %vm851, %v849, 0
          %858 = vmatprep.subr.bf16.mxu0 0
          %859 = vmatpush1.bf16.xpose.msra.mxu0 0
          %860 = vmatprep.subr.bf16.mxu0 0
          %861 = vmatpush1.bf16.xpose.msra.mxu0 0
          %862 = vmatprep.subr.bf16.mxu0 0
          %863 = vmatpush1.bf16.xpose.msra.mxu0 0
          %864 = vmatprep.subr.bf16.mxu0 0
          %865 = vmatpush1.bf16.xpose.msra.mxu0 0
          %866 = vmatprep.subr.bf16.mxu0 0
          %867 = vmatpush1.bf16.xpose.msra.mxu0 0
          %868 = vmatprep.subr.bf16.mxu0 0
          %869 = vmatpush1.bf16.xpose.msra.mxu0 0
          %870 = vmatprep.subr.bf16.mxu0 0
          %871 = vmatpush1.bf16.xpose.msra.mxu0 0
          %872 = vmatprep.subr.bf16.mxu0 0
          %873 = vmatpush1.bf16.xpose.msra.mxu0 %v856
          %874 = vmatprep.subr.bf16.mxu0 0
          %875 = vmatpush2.bf16.xpose.msra.mxu0 0
          %876 = vmatprep.subr.bf16.mxu0 0
          %877 = vmatpush2.bf16.xpose.msra.mxu0 0
          %878 = vmatprep.subr.bf16.mxu0 0
          %879 = vmatpush2.bf16.xpose.msra.mxu0 0
          %880 = vmatprep.subr.bf16.mxu0 0
          %881 = vmatpush2.bf16.xpose.msra.mxu0 0
          %882 = vmatprep.subr.bf16.mxu0 0
          %883 = vmatpush2.bf16.xpose.msra.mxu0 0
          %884 = vmatprep.subr.bf16.mxu0 0
          %885 = vmatpush2.bf16.xpose.msra.mxu0 0
          %886 = vmatprep.subr.bf16.mxu0 0
          %887 = vmatpush2.bf16.xpose.msra.mxu0 0
          %888 = vmatprep.subr.bf16.mxu0 0
          %889 = vmatpush2.bf16.xpose.msra.mxu0 0
          %890 = vmatprep.mubr.bf16.mxu0 0
          %891 = vmatmul.mubr.bf16.gmra.mxu0 %v853
          %v892 = vpop.f32.mrf.mxu0
          %v893 = vadd.f32 0.0, %v892
          %v894 = vpop.f32.mrf.mxu0
          %v895 = vpop.f32.mrf.mxu0
          %v896 = vadd.f32 0.0, %v895
          %v897 = vpop.f32.mrf.mxu0
          %898 = vdwg.mxu0
          %v899 = vmul.f32 %v893, 0.17677669
          %v900 = vmul.f32 %v896, 0.17677669
          %v901 = vsel %vm585, -1e+09, %v899
          %v902 = vsel %vm586, -1e+09, %v900
          %vm903 = vcmask 130048
          %v904 = vsel %vm903, %v901, -inf
          %905 = vmax.xlane.f32.xlu0 %v904
          %v906 = vpop.xlane.xlu0 %905
          %v907 = vsel %vm903, %v902, -inf
          %908 = vmax.xlane.f32.xlu0 %v907
          %v909 = vpop.xlane.xlu0 %908
          %v910 = vsub.f32 %v901, %v906
          %v911 = vsub.f32 %v902, %v909
          %v912 = vmul.f32 %v910, 1.442695
          %v913 = vpow.pop %v912
          %v914 = vmul.f32 %v911, 1.442695
          %v915 = vpow.pop %v914
          %v916 = vsel %vm903, %v913, 0.0
          %917 = vadd.xlane.f32.xlu0 %v916
          %v918 = vpop.xlane.xlu0 %917
          %v919 = vsel %vm903, %v915, 0.0
          %920 = vadd.xlane.f32.xlu0 %v919
          %v921 = vpop.xlane.xlu0 %920
          %v922 = vrcp.pop %v918
          %v923 = vrcp.pop %v921
          %v924 = vmul.f32 %v913, %v922
          %v925 = vmul.f32 %v915, %v923
          %v926 = vpack.c.bf16 %v925, %v924
          %v928 = vunpack.c.l.b16 %v926
          %v929 = vunpack.c.h.b16 %v926
          %v930 = vpack.c.b16 %v928, %v928
          %v931 = vpack.c.b16 %v929, %v929
          %vm934 = vcmask 125952
          %935 = vst.msk [vmem:[%s567] sm:$0xf] %vm934, %v930
          %936 = vst.msk [vmem:[%s567 + $0x4] sm:$0xf] %vm934, %v931
          %v938 = vsel %vm903, %v926, 0
          %940 = vmatprep.subr.bf16.mxu0 0
          %941 = vmatpush1.bf16.msra.mxu0 0
          %942 = vmatprep.subr.bf16.mxu0 0
          %943 = vmatpush1.bf16.msra.mxu0 0
          %944 = vmatprep.subr.bf16.mxu0 0
          %945 = vmatpush1.bf16.msra.mxu0 0
          %946 = vmatprep.subr.bf16.mxu0 0
          %947 = vmatpush1.bf16.msra.mxu0 0
          %948 = vmatprep.subr.bf16.mxu0 0
          %949 = vmatpush1.bf16.msra.mxu0 0
          %950 = vmatprep.subr.bf16.mxu0 0
          %951 = vmatpush1.bf16.msra.mxu0 0
          %952 = vmatprep.subr.bf16.mxu0 0
          %953 = vmatpush1.bf16.msra.mxu0 0
          %954 = vmatprep.subr.bf16.mxu0 0
          %955 = vmatpush1.bf16.msra.mxu0 %v850
          %956 = vmatprep.subr.bf16.mxu0 0
          %957 = vmatpush2.bf16.msra.mxu0 0
          %958 = vmatprep.subr.bf16.mxu0 0
          %959 = vmatpush2.bf16.msra.mxu0 0
          %960 = vmatprep.subr.bf16.mxu0 0
          %961 = vmatpush2.bf16.msra.mxu0 0
          %962 = vmatprep.subr.bf16.mxu0 0
          %963 = vmatpush2.bf16.msra.mxu0 0
          %964 = vmatprep.subr.bf16.mxu0 0
          %965 = vmatpush2.bf16.msra.mxu0 0
          %966 = vmatprep.subr.bf16.mxu0 0
          %967 = vmatpush2.bf16.msra.mxu0 0
          %968 = vmatprep.subr.bf16.mxu0 0
          %969 = vmatpush2.bf16.msra.mxu0 0
          %970 = vmatprep.subr.bf16.mxu0 0
          %971 = vmatpush2.bf16.msra.mxu0 0
          %972 = vmatprep.mubr.bf16.mxu0 0
          %973 = vmatmul.mubr.bf16.gmra.mxu0 %v938
          %v974 = vpop.f32.mrf.mxu0
          %v975 = vadd.f32 0.0, %v974
          %v976 = vpop.f32.mrf.mxu0
          %v977 = vpop.f32.mrf.mxu0
          %v978 = vadd.f32 0.0, %v977
          %v979 = vpop.f32.mrf.mxu0
          %980 = vdwg.mxu0
          %982 = vrot.lane.b32.xlu0 %v848, 96
          %v983 = vpop.permute.xlu0 %982
          %985 = vrot.lane.b32.xlu0 %v849, 96
          %v986 = vpop.permute.xlu0 %985
          %v988 = vsel %vm851, %v983, 0
          %v991 = vsel %vm851, %v986, 0
          %993 = vmatprep.subr.bf16.mxu0 0
          %994 = vmatpush1.bf16.xpose.msra.mxu0 0
          %995 = vmatprep.subr.bf16.mxu0 0
          %996 = vmatpush1.bf16.xpose.msra.mxu0 0
          %997 = vmatprep.subr.bf16.mxu0 0
          %998 = vmatpush1.bf16.xpose.msra.mxu0 0
          %999 = vmatprep.subr.bf16.mxu0 0
          %1000 = vmatpush1.bf16.xpose.msra.mxu0 0
          %1001 = vmatprep.subr.bf16.mxu0 0
          %1002 = vmatpush1.bf16.xpose.msra.mxu0 0
          %1003 = vmatprep.subr.bf16.mxu0 0
          %1004 = vmatpush1.bf16.xpose.msra.mxu0 0
          %1005 = vmatprep.subr.bf16.mxu0 0
          %1006 = vmatpush1.bf16.xpose.msra.mxu0 0
          %1007 = vmatprep.subr.bf16.mxu0 0
          %1008 = vmatpush1.bf16.xpose.msra.mxu0 %v991
          %1009 = vmatprep.subr.bf16.mxu0 0
          %1010 = vmatpush2.bf16.xpose.msra.mxu0 0
          %1011 = vmatprep.subr.bf16.mxu0 0
          %1012 = vmatpush2.bf16.xpose.msra.mxu0 0
          %1013 = vmatprep.subr.bf16.mxu0 0
          %1014 = vmatpush2.bf16.xpose.msra.mxu0 0
          %1015 = vmatprep.subr.bf16.mxu0 0
          %1016 = vmatpush2.bf16.xpose.msra.mxu0 0
          %1017 = vmatprep.subr.bf16.mxu0 0
          %1018 = vmatpush2.bf16.xpose.msra.mxu0 0
          %1019 = vmatprep.subr.bf16.mxu0 0
          %1020 = vmatpush2.bf16.xpose.msra.mxu0 0
          %1021 = vmatprep.subr.bf16.mxu0 0
          %1022 = vmatpush2.bf16.xpose.msra.mxu0 0
          %1023 = vmatprep.subr.bf16.mxu0 0
          %1024 = vmatpush2.bf16.xpose.msra.mxu0 0
          %1025 = vmatprep.mubr.bf16.mxu0 0
          %1026 = vmatmul.mubr.bf16.gmra.mxu0 %v988
          %v1027 = vpop.f32.mrf.mxu0
          %v1028 = vadd.f32 0.0, %v1027
          %v1029 = vpop.f32.mrf.mxu0
          %v1030 = vpop.f32.mrf.mxu0
          %v1031 = vadd.f32 0.0, %v1030
          %v1032 = vpop.f32.mrf.mxu0
          %1033 = vdwg.mxu0
          %v1034 = vmul.f32 %v1028, 0.17677669
          %v1035 = vmul.f32 %v1031, 0.17677669
          %v1036 = vsel %vm585, -1e+09, %v1034
          %v1037 = vsel %vm586, -1e+09, %v1035
          %v1038 = vsel %vm903, %v1036, -inf
          %1039 = vmax.xlane.f32.xlu0 %v1038
          %v1040 = vpop.xlane.xlu0 %1039
          %v1041 = vsel %vm903, %v1037, -inf
          %1042 = vmax.xlane.f32.xlu0 %v1041
          %v1043 = vpop.xlane.xlu0 %1042
          %v1044 = vsub.f32 %v1036, %v1040
          %v1045 = vsub.f32 %v1037, %v1043
          %v1046 = vmul.f32 %v1044, 1.442695
          %v1047 = vpow.pop %v1046
          %v1048 = vmul.f32 %v1045, 1.442695
          %v1049 = vpow.pop %v1048
          %v1050 = vsel %vm903, %v1047, 0.0
          %1051 = vadd.xlane.f32.xlu0 %v1050
          %v1052 = vpop.xlane.xlu0 %1051
          %v1053 = vsel %vm903, %v1049, 0.0
          %1054 = vadd.xlane.f32.xlu0 %v1053
          %v1055 = vpop.xlane.xlu0 %1054
          %v1056 = vrcp.pop %v1052
          %v1057 = vrcp.pop %v1055
          %v1058 = vmul.f32 %v1047, %v1056
          %v1059 = vmul.f32 %v1049, %v1057
          %v1060 = vpack.c.bf16 %v1059, %v1058
          %v1062 = vunpack.c.l.b16 %v1060
          %v1063 = vunpack.c.h.b16 %v1060
          %v1064 = vpack.c.b16 %v1062, %v1062
          %v1065 = vpack.c.b16 %v1063, %v1063
          %s1068 = scalar_lea.vmem %s567, 8 [#allocation17]
          %1069 = vst.msk [vmem:[%s1068] sm:$0xf] %vm934, %v1064
          %1070 = vst.msk [vmem:[%s1068 + $0x4] sm:$0xf] %vm934, %v1065
          %1072 = vrot.lane.b32.xlu0 %v850, 96
          %v1073 = vpop.permute.xlu0 %1072
          %v1076 = vsel %vm903, %v1060, 0
          %1078 = vmatprep.subr.bf16.mxu0 0
          %1079 = vmatpush1.bf16.msra.mxu0 0
          %1080 = vmatprep.subr.bf16.mxu0 0
          %1081 = vmatpush1.bf16.msra.mxu0 0
          %1082 = vmatprep.subr.bf16.mxu0 0
          %1083 = vmatpush1.bf16.msra.mxu0 0
          %1084 = vmatprep.subr.bf16.mxu0 0
          %1085 = vmatpush1.bf16.msra.mxu0 0
          %1086 = vmatprep.subr.bf16.mxu0 0
          %1087 = vmatpush1.bf16.msra.mxu0 0
          %1088 = vmatprep.subr.bf16.mxu0 0
          %1089 = vmatpush1.bf16.msra.mxu0 0
          %1090 = vmatprep.subr.bf16.mxu0 0
          %1091 = vmatpush1.bf16.msra.mxu0 0
          %1092 = vmatprep.subr.bf16.mxu0 0
          %1093 = vmatpush1.bf16.msra.mxu0 %v1073
          %1094 = vmatprep.subr.bf16.mxu0 0
          %1095 = vmatpush2.bf16.msra.mxu0 0
          %1096 = vmatprep.subr.bf16.mxu0 0
          %1097 = vmatpush2.bf16.msra.mxu0 0
          %1098 = vmatprep.subr.bf16.mxu0 0
          %1099 = vmatpush2.bf16.msra.mxu0 0
          %1100 = vmatprep.subr.bf16.mxu0 0
          %1101 = vmatpush2.bf16.msra.mxu0 0
          %1102 = vmatprep.subr.bf16.mxu0 0
          %1103 = vmatpush2.bf16.msra.mxu0 0
          %1104 = vmatprep.subr.bf16.mxu0 0
          %1105 = vmatpush2.bf16.msra.mxu0 0
          %1106 = vmatprep.subr.bf16.mxu0 0
          %1107 = vmatpush2.bf16.msra.mxu0 0
          %1108 = vmatprep.subr.bf16.mxu0 0
          %1109 = vmatpush2.bf16.msra.mxu0 0
          %1110 = vmatprep.mubr.bf16.mxu0 0
          %1111 = vmatmul.mubr.bf16.gmra.mxu0 %v1076
          %v1112 = vpop.f32.mrf.mxu0
          %v1113 = vadd.f32 0.0, %v1112
          %v1114 = vpop.f32.mrf.mxu0
          %v1115 = vpop.f32.mrf.mxu0
          %v1116 = vadd.f32 0.0, %v1115
          %v1117 = vpop.f32.mrf.mxu0
          %1118 = vdwg.mxu0
          %1119 = vrot.lane.b32.xlu0 %v848, 64
          %v1120 = vpop.permute.xlu0 %1119
          %1121 = vrot.lane.b32.xlu0 %v849, 64
          %v1122 = vpop.permute.xlu0 %1121
          %v1124 = vsel %vm851, %v1120, 0
          %v1127 = vsel %vm851, %v1122, 0
          %1129 = vmatprep.subr.bf16.mxu0 0
          %1130 = vmatpush1.bf16.xpose.msra.mxu0 0
          %1131 = vmatprep.subr.bf16.mxu0 0
          %1132 = vmatpush1.bf16.xpose.msra.mxu0 0
          %1133 = vmatprep.subr.bf16.mxu0 0
          %1134 = vmatpush1.bf16.xpose.msra.mxu0 0
          %1135 = vmatprep.subr.bf16.mxu0 0
          %1136 = vmatpush1.bf16.xpose.msra.mxu0 0
          %1137 = vmatprep.subr.bf16.mxu0 0
          %1138 = vmatpush1.bf16.xpose.msra.mxu0 0
          %1139 = vmatprep.subr.bf16.mxu0 0
          %1140 = vmatpush1.bf16.xpose.msra.mxu0 0
          %1141 = vmatprep.subr.bf16.mxu0 0
          %1142 = vmatpush1.bf16.xpose.msra.mxu0 0
          %1143 = vmatprep.subr.bf16.mxu0 0
          %1144 = vmatpush1.bf16.xpose.msra.mxu0 %v1127
          %1145 = vmatprep.subr.bf16.mxu0 0
          %1146 = vmatpush2.bf16.xpose.msra.mxu0 0
          %1147 = vmatprep.subr.bf16.mxu0 0
          %1148 = vmatpush2.bf16.xpose.msra.mxu0 0
          %1149 = vmatprep.subr.bf16.mxu0 0
          %1150 = vmatpush2.bf16.xpose.msra.mxu0 0
          %1151 = vmatprep.subr.bf16.mxu0 0
          %1152 = vmatpush2.bf16.xpose.msra.mxu0 0
          %1153 = vmatprep.subr.bf16.mxu0 0
          %1154 = vmatpush2.bf16.xpose.msra.mxu0 0
          %1155 = vmatprep.subr.bf16.mxu0 0
          %1156 = vmatpush2.bf16.xpose.msra.mxu0 0
          %1157 = vmatprep.subr.bf16.mxu0 0
          %1158 = vmatpush2.bf16.xpose.msra.mxu0 0
          %1159 = vmatprep.subr.bf16.mxu0 0
          %1160 = vmatpush2.bf16.xpose.msra.mxu0 0
          %1161 = vmatprep.mubr.bf16.mxu0 0
          %1162 = vmatmul.mubr.bf16.gmra.mxu0 %v1124
          %v1163 = vpop.f32.mrf.mxu0
          %v1164 = vadd.f32 0.0, %v1163
          %v1165 = vpop.f32.mrf.mxu0
          %v1166 = vpop.f32.mrf.mxu0
          %v1167 = vadd.f32 0.0, %v1166
          %v1168 = vpop.f32.mrf.mxu0
          %1169 = vdwg.mxu0
          %v1170 = vmul.f32 %v1164, 0.17677669
          %v1171 = vmul.f32 %v1167, 0.17677669
          %v1172 = vsel %vm585, -1e+09, %v1170
          %v1173 = vsel %vm586, -1e+09, %v1171
          %v1174 = vsel %vm903, %v1172, -inf
          %1175 = vmax.xlane.f32.xlu0 %v1174
          %v1176 = vpop.xlane.xlu0 %1175
          %v1177 = vsel %vm903, %v1173, -inf
          %1178 = vmax.xlane.f32.xlu0 %v1177
          %v1179 = vpop.xlane.xlu0 %1178
          %v1180 = vsub.f32 %v1172, %v1176
          %v1181 = vsub.f32 %v1173, %v1179
          %v1182 = vmul.f32 %v1180, 1.442695
          %v1183 = vpow.pop %v1182
          %v1184 = vmul.f32 %v1181, 1.442695
          %v1185 = vpow.pop %v1184
          %v1186 = vsel %vm903, %v1183, 0.0
          %1187 = vadd.xlane.f32.xlu0 %v1186
          %v1188 = vpop.xlane.xlu0 %1187
          %v1189 = vsel %vm903, %v1185, 0.0
          %1190 = vadd.xlane.f32.xlu0 %v1189
          %v1191 = vpop.xlane.xlu0 %1190
          %v1192 = vrcp.pop %v1188
          %v1193 = vrcp.pop %v1191
          %v1194 = vmul.f32 %v1183, %v1192
          %v1195 = vmul.f32 %v1185, %v1193
          %v1196 = vpack.c.bf16 %v1195, %v1194
          %v1198 = vunpack.c.l.b16 %v1196
          %v1199 = vunpack.c.h.b16 %v1196
          %v1200 = vpack.c.b16 %v1198, %v1198
          %v1201 = vpack.c.b16 %v1199, %v1199
          %s1204 = scalar_lea.vmem %s567, 16 [#allocation17]
          %1205 = vst.msk [vmem:[%s1204] sm:$0xf] %vm934, %v1200
          %1206 = vst.msk [vmem:[%s1204 + $0x4] sm:$0xf] %vm934, %v1201
          %1207 = vrot.lane.b32.xlu0 %v850, 64
          %v1208 = vpop.permute.xlu0 %1207
          %v1211 = vsel %vm903, %v1196, 0
          %1213 = vmatprep.subr.bf16.mxu0 0
          %1214 = vmatpush1.bf16.msra.mxu0 0
          %1215 = vmatprep.subr.bf16.mxu0 0
          %1216 = vmatpush1.bf16.msra.mxu0 0
          %1217 = vmatprep.subr.bf16.mxu0 0
          %1218 = vmatpush1.bf16.msra.mxu0 0
          %1219 = vmatprep.subr.bf16.mxu0 0
          %1220 = vmatpush1.bf16.msra.mxu0 0
          %1221 = vmatprep.subr.bf16.mxu0 0
          %1222 = vmatpush1.bf16.msra.mxu0 0
          %1223 = vmatprep.subr.bf16.mxu0 0
          %1224 = vmatpush1.bf16.msra.mxu0 0
          %1225 = vmatprep.subr.bf16.mxu0 0
          %1226 = vmatpush1.bf16.msra.mxu0 0
          %1227 = vmatprep.subr.bf16.mxu0 0
          %1228 = vmatpush1.bf16.msra.mxu0 %v1208
          %1229 = vmatprep.subr.bf16.mxu0 0
          %1230 = vmatpush2.bf16.msra.mxu0 0
          %1231 = vmatprep.subr.bf16.mxu0 0
          %1232 = vmatpush2.bf16.msra.mxu0 0
          %1233 = vmatprep.subr.bf16.mxu0 0
          %1234 = vmatpush2.bf16.msra.mxu0 0
          %1235 = vmatprep.subr.bf16.mxu0 0
          %1236 = vmatpush2.bf16.msra.mxu0 0
          %1237 = vmatprep.subr.bf16.mxu0 0
          %1238 = vmatpush2.bf16.msra.mxu0 0
          %1239 = vmatprep.subr.bf16.mxu0 0
          %1240 = vmatpush2.bf16.msra.mxu0 0
          %1241 = vmatprep.subr.bf16.mxu0 0
          %1242 = vmatpush2.bf16.msra.mxu0 0
          %1243 = vmatprep.subr.bf16.mxu0 0
          %1244 = vmatpush2.bf16.msra.mxu0 0
          %1245 = vmatprep.mubr.bf16.mxu0 0
          %1246 = vmatmul.mubr.bf16.gmra.mxu0 %v1211
          %v1247 = vpop.f32.mrf.mxu0
          %v1248 = vadd.f32 0.0, %v1247
          %v1249 = vpop.f32.mrf.mxu0
          %v1250 = vpop.f32.mrf.mxu0
          %v1251 = vadd.f32 0.0, %v1250
          %v1252 = vpop.f32.mrf.mxu0
          %1253 = vdwg.mxu0
          %1254 = vrot.lane.b32.xlu0 %v848, 32
          %v1255 = vpop.permute.xlu0 %1254
          %1256 = vrot.lane.b32.xlu0 %v849, 32
          %v1257 = vpop.permute.xlu0 %1256
          %v1259 = vsel %vm851, %v1255, 0
          %v1262 = vsel %vm851, %v1257, 0
          %1264 = vmatprep.subr.bf16.mxu0 0
          %1265 = vmatpush1.bf16.xpose.msra.mxu0 0
          %1266 = vmatprep.subr.bf16.mxu0 0
          %1267 = vmatpush1.bf16.xpose.msra.mxu0 0
          %1268 = vmatprep.subr.bf16.mxu0 0
          %1269 = vmatpush1.bf16.xpose.msra.mxu0 0
          %1270 = vmatprep.subr.bf16.mxu0 0
          %1271 = vmatpush1.bf16.xpose.msra.mxu0 0
          %1272 = vmatprep.subr.bf16.mxu0 0
          %1273 = vmatpush1.bf16.xpose.msra.mxu0 0
          %1274 = vmatprep.subr.bf16.mxu0 0
          %1275 = vmatpush1.bf16.xpose.msra.mxu0 0
          %1276 = vmatprep.subr.bf16.mxu0 0
          %1277 = vmatpush1.bf16.xpose.msra.mxu0 0
          %1278 = vmatprep.subr.bf16.mxu0 0
          %1279 = vmatpush1.bf16.xpose.msra.mxu0 %v1262
          %1280 = vmatprep.subr.bf16.mxu0 0
          %1281 = vmatpush2.bf16.xpose.msra.mxu0 0
          %1282 = vmatprep.subr.bf16.mxu0 0
          %1283 = vmatpush2.bf16.xpose.msra.mxu0 0
          %1284 = vmatprep.subr.bf16.mxu0 0
          %1285 = vmatpush2.bf16.xpose.msra.mxu0 0
          %1286 = vmatprep.subr.bf16.mxu0 0
          %1287 = vmatpush2.bf16.xpose.msra.mxu0 0
          %1288 = vmatprep.subr.bf16.mxu0 0
          %1289 = vmatpush2.bf16.xpose.msra.mxu0 0
          %1290 = vmatprep.subr.bf16.mxu0 0
          %1291 = vmatpush2.bf16.xpose.msra.mxu0 0
          %1292 = vmatprep.subr.bf16.mxu0 0
          %1293 = vmatpush2.bf16.xpose.msra.mxu0 0
          %1294 = vmatprep.subr.bf16.mxu0 0
          %1295 = vmatpush2.bf16.xpose.msra.mxu0 0
          %1296 = vmatprep.mubr.bf16.mxu0 0
          %1297 = vmatmul.mubr.bf16.gmra.mxu0 %v1259
          %v1298 = vpop.f32.mrf.mxu0
          %v1299 = vadd.f32 0.0, %v1298
          %v1300 = vpop.f32.mrf.mxu0
          %v1301 = vpop.f32.mrf.mxu0
          %v1302 = vadd.f32 0.0, %v1301
          %v1303 = vpop.f32.mrf.mxu0
          %1304 = vdwg.mxu0
          %v1305 = vmul.f32 %v1299, 0.17677669
          %v1306 = vmul.f32 %v1302, 0.17677669
          %v1307 = vsel %vm585, -1e+09, %v1305
          %v1308 = vsel %vm586, -1e+09, %v1306
          %v1309 = vsel %vm903, %v1307, -inf
          %1310 = vmax.xlane.f32.xlu0 %v1309
          %v1311 = vpop.xlane.xlu0 %1310
          %v1312 = vsel %vm903, %v1308, -inf
          %1313 = vmax.xlane.f32.xlu0 %v1312
          %v1314 = vpop.xlane.xlu0 %1313
          %v1315 = vsub.f32 %v1307, %v1311
          %v1316 = vsub.f32 %v1308, %v1314
          %v1317 = vmul.f32 %v1315, 1.442695
          %v1318 = vpow.pop %v1317
          %v1319 = vmul.f32 %v1316, 1.442695
          %v1320 = vpow.pop %v1319
          %v1321 = vsel %vm903, %v1318, 0.0
          %1322 = vadd.xlane.f32.xlu0 %v1321
          %v1323 = vpop.xlane.xlu0 %1322
          %v1324 = vsel %vm903, %v1320, 0.0
          %1325 = vadd.xlane.f32.xlu0 %v1324
          %v1326 = vpop.xlane.xlu0 %1325
          %v1327 = vrcp.pop %v1323
          %v1328 = vrcp.pop %v1326
          %v1329 = vmul.f32 %v1318, %v1327
          %v1330 = vmul.f32 %v1320, %v1328
          %v1331 = vpack.c.bf16 %v1330, %v1329
          %v1333 = vunpack.c.l.b16 %v1331
          %v1334 = vunpack.c.h.b16 %v1331
          %v1335 = vpack.c.b16 %v1333, %v1333
          %v1336 = vpack.c.b16 %v1334, %v1334
          %s1339 = scalar_lea.vmem %s567, 24 [#allocation17]
          %1340 = vst.msk [vmem:[%s1339] sm:$0xf] %vm934, %v1335
          %1341 = vst.msk [vmem:[%s1339 + $0x4] sm:$0xf] %vm934, %v1336
          %1342 = vrot.lane.b32.xlu0 %v850, 32
          %v1343 = vpop.permute.xlu0 %1342
          %v1346 = vsel %vm903, %v1331, 0
          %1348 = vmatprep.subr.bf16.mxu0 0
          %1349 = vmatpush1.bf16.msra.mxu0 0
          %1350 = vmatprep.subr.bf16.mxu0 0
          %1351 = vmatpush1.bf16.msra.mxu0 0
          %1352 = vmatprep.subr.bf16.mxu0 0
          %1353 = vmatpush1.bf16.msra.mxu0 0
          %1354 = vmatprep.subr.bf16.mxu0 0
          %1355 = vmatpush1.bf16.msra.mxu0 0
          %1356 = vmatprep.subr.bf16.mxu0 0
          %1357 = vmatpush1.bf16.msra.mxu0 0
          %1358 = vmatprep.subr.bf16.mxu0 0
          %1359 = vmatpush1.bf16.msra.mxu0 0
          %1360 = vmatprep.subr.bf16.mxu0 0
          %1361 = vmatpush1.bf16.msra.mxu0 0
          %1362 = vmatprep.subr.bf16.mxu0 0
          %1363 = vmatpush1.bf16.msra.mxu0 %v1343
          %1364 = vmatprep.subr.bf16.mxu0 0
          %1365 = vmatpush2.bf16.msra.mxu0 0
          %1366 = vmatprep.subr.bf16.mxu0 0
          %1367 = vmatpush2.bf16.msra.mxu0 0
          %1368 = vmatprep.subr.bf16.mxu0 0
          %1369 = vmatpush2.bf16.msra.mxu0 0
          %1370 = vmatprep.subr.bf16.mxu0 0
          %1371 = vmatpush2.bf16.msra.mxu0 0
          %1372 = vmatprep.subr.bf16.mxu0 0
          %1373 = vmatpush2.bf16.msra.mxu0 0
          %1374 = vmatprep.subr.bf16.mxu0 0
          %1375 = vmatpush2.bf16.msra.mxu0 0
          %1376 = vmatprep.subr.bf16.mxu0 0
          %1377 = vmatpush2.bf16.msra.mxu0 0
          %1378 = vmatprep.subr.bf16.mxu0 0
          %1379 = vmatpush2.bf16.msra.mxu0 0
          %1380 = vmatprep.mubr.bf16.mxu0 0
          %1381 = vmatmul.mubr.bf16.gmra.mxu0 %v1346
          %v1382 = vpop.f32.mrf.mxu0
          %v1383 = vadd.f32 0.0, %v1382
          %v1384 = vpop.f32.mrf.mxu0
          %v1385 = vpop.f32.mrf.mxu0
          %v1386 = vadd.f32 0.0, %v1385
          %v1387 = vpop.f32.mrf.mxu0
          %1388 = vdwg.mxu0
          %v1389 = vpack.c.bf16 %v978, %v975
          %v1390 = vpack.c.bf16 %v1116, %v1113
          %v1391 = vpack.c.bf16 %v1251, %v1248
          %v1392 = vpack.c.bf16 %v1386, %v1383
          %1394 = vrot.lane.b32.xlu0 %v1390, 32
          %v1395 = vpop.permute.xlu0 %1394
          %1397 = vrot.lane.b32.xlu0 %v1391, 64
          %v1398 = vpop.permute.xlu0 %1397
          %1400 = vrot.lane.b32.xlu0 %v1392, 96
          %v1401 = vpop.permute.xlu0 %1400
          %v1404 = vsel %vm851, %v1389, %v1395
          %vm1405 = vcmask 523264
          %v1407 = vsel %vm1405, %v1404, %v1398
          %vm1408 = vcmask 785408
          %v1410 = vsel %vm1408, %v1407, %v1401
          %v1412 = vld [vmem:[#allocation10] sm:$0xf]
          %v1413 = vld [vmem:[#allocation10 + $0x4] sm:$0xf]
          %v1414 = vld [vmem:[#allocation10 + $0x8] sm:$0xf]
          %v1415 = vld [vmem:[#allocation10 + $0xc] sm:$0xf]
          %v1416 = vld [vmem:[#allocation10 + $0x10] sm:$0xf]
          %v1417 = vld [vmem:[#allocation10 + $0x14] sm:$0xf]
          %v1418 = vld [vmem:[#allocation10 + $0x18] sm:$0xf]
          %v1419 = vld [vmem:[#allocation10 + $0x1c] sm:$0xf]
          %v1420 = vld [vmem:[#allocation10 + $0x20] sm:$0xf]
          %v1421 = vld [vmem:[#allocation10 + $0x24] sm:$0xf]
          %v1422 = vld [vmem:[#allocation10 + $0x28] sm:$0xf]
          %v1423 = vld [vmem:[#allocation10 + $0x2c] sm:$0xf]
          %v1424 = vld [vmem:[#allocation10 + $0x30] sm:$0xf]
          %v1425 = vld [vmem:[#allocation10 + $0x34] sm:$0xf]
          %v1426 = vld [vmem:[#allocation10 + $0x38] sm:$0xf]
          %v1427 = vld [vmem:[#allocation10 + $0x3c] sm:$0xf]
          %v1428 = vld [vmem:[%s5] sm:$0x1]
          %v1430 = vlaneseq
          %v1431 = vshrl.u32 %v1430, 7
          %v1432 = vsub.s32 0, %v1431
          %v1433 = vrot.slane %v1428, %v1432
          %v1451 = vunpack.c.l.b16 %v1412
          %v1452 = vunpack.c.l.b16 %v1413
          %v1453 = vunpack.c.l.b16 %v1414
          %v1454 = vunpack.c.l.b16 %v1415
          %v1455 = vunpack.c.l.b16 %v1416
          %v1456 = vunpack.c.l.b16 %v1417
          %v1457 = vunpack.c.l.b16 %v1418
          %v1458 = vunpack.c.l.b16 %v1419
          %v1459 = vunpack.c.l.b16 %v1420
          %v1460 = vunpack.c.l.b16 %v1421
          %v1461 = vunpack.c.l.b16 %v1422
          %v1462 = vunpack.c.l.b16 %v1423
          %v1463 = vunpack.c.l.b16 %v1424
          %v1464 = vunpack.c.l.b16 %v1425
          %v1465 = vunpack.c.l.b16 %v1426
          %v1466 = vunpack.c.l.b16 %v1427
          %v1467 = vpack.c.b16 %v1452, %v1451
          %v1468 = vpack.c.b16 %v1454, %v1453
          %v1469 = vpack.c.b16 %v1456, %v1455
          %v1470 = vpack.c.b16 %v1458, %v1457
          %v1471 = vpack.c.b16 %v1460, %v1459
          %v1472 = vpack.c.b16 %v1462, %v1461
          %v1473 = vpack.c.b16 %v1464, %v1463
          %v1474 = vpack.c.b16 %v1466, %v1465
          %1483 = vmatprep.subr.bf16.mxu0 0
          %1484 = vmatpush1.bf16.msra.mxu0 %v1474
          %1485 = vmatprep.subr.bf16.mxu0 0
          %1486 = vmatpush1.bf16.msra.mxu0 %v1473
          %1487 = vmatprep.subr.bf16.mxu0 0
          %1488 = vmatpush1.bf16.msra.mxu0 %v1472
          %1489 = vmatprep.subr.bf16.mxu0 0
          %1490 = vmatpush1.bf16.msra.mxu0 %v1471
          %1491 = vmatprep.subr.bf16.mxu0 0
          %1492 = vmatpush1.bf16.msra.mxu0 %v1470
          %1493 = vmatprep.subr.bf16.mxu0 0
          %1494 = vmatpush1.bf16.msra.mxu0 %v1469
          %1495 = vmatprep.subr.bf16.mxu0 0
          %1496 = vmatpush1.bf16.msra.mxu0 %v1468
          %1497 = vmatprep.subr.bf16.mxu0 0
          %1498 = vmatpush1.bf16.msra.mxu0 %v1467
          %1499 = vmatprep.subr.bf16.mxu0 0
          %1500 = vmatpush2.bf16.msra.mxu0 0
          %1501 = vmatprep.subr.bf16.mxu0 0
          %1502 = vmatpush2.bf16.msra.mxu0 0
          %1503 = vmatprep.subr.bf16.mxu0 0
          %1504 = vmatpush2.bf16.msra.mxu0 0
          %1505 = vmatprep.subr.bf16.mxu0 0
          %1506 = vmatpush2.bf16.msra.mxu0 0
          %1507 = vmatprep.subr.bf16.mxu0 0
          %1508 = vmatpush2.bf16.msra.mxu0 0
          %1509 = vmatprep.subr.bf16.mxu0 0
          %1510 = vmatpush2.bf16.msra.mxu0 0
          %1511 = vmatprep.subr.bf16.mxu0 0
          %1512 = vmatpush2.bf16.msra.mxu0 0
          %1513 = vmatprep.subr.bf16.mxu0 0
          %1514 = vmatpush2.bf16.msra.mxu0 0
          %1515 = vmatprep.mubr.bf16.mxu0 0
          %1516 = vmatmul.mubr.bf16.gmra.mxu0 %v1410
          %v1517 = vpop.f32.mrf.mxu0
          %v1518 = vadd.f32 %v1433, %v1517
          %v1519 = vpop.f32.mrf.mxu0
          %v1520 = vpop.f32.mrf.mxu0
          %v1521 = vadd.f32 %v1433, %v1520
          %v1522 = vpop.f32.mrf.mxu0
          %1523 = vdwg.mxu0
          %v1524 = vadd.f32 %v1518, %v580
          %v1525 = vadd.f32 %v1521, %v581
          %1526 = vadd.xlane.f32.xlu0 %v1524
          %v1527 = vpop.xlane.xlu0 %1526
          %1528 = vadd.xlane.f32.xlu0 %v1525
          %v1529 = vpop.xlane.xlu0 %1528
          %v1530 = vrcp.pop 128.0
          %v1531 = vmul.f32 %v1527, %v1530
          %v1532 = vmul.f32 %v1529, %v1530
          %v1533 = vsub.f32 %v1524, %v1531
          %v1534 = vsub.f32 %v1525, %v1532
          %v1535 = vmul.f32 %v1533, %v1533
          %v1536 = vmul.f32 %v1534, %v1534
          %1537 = vadd.xlane.f32.xlu0 %v1535
          %v1538 = vpop.xlane.xlu0 %1537
          %1539 = vadd.xlane.f32.xlu0 %v1536
          %v1540 = vpop.xlane.xlu0 %1539
          %v1541 = vmul.f32 %v1538, %v1530
          %v1542 = vmul.f32 %v1540, %v1530
          %v1543 = vadd.f32 %v1541, 1e-05
          %v1544 = vadd.f32 %v1542, 1e-05
          %v1545 = vrsqrt.pop %v1543
          %v1546 = vrsqrt.pop %v1544
          %v1547 = vmul.f32 %v1533, %v1545
          %v1548 = vmul.f32 %v1534, %v1546
          %v1549 = vpack.c.bf16 %v1548, %v1547
          %v1551 = vunpack.c.l.b16 %v1549
          %v1552 = vunpack.c.h.b16 %v1549
          %v1553 = vpack.c.b16 %v1551, %v1551
          %v1554 = vpack.c.b16 %v1552, %v1552
          %1557 = vst [vmem:[#allocation2] sm:$0xf] %v1553
          %1558 = vst [vmem:[#allocation2 + $0x4] sm:$0xf] %v1554
          %v1559 = vld [vmem:[#allocation15] sm:$0x1]
          %v1561 = vlaneseq
          %v1562 = vshrl.u32 %v1561, 7
          %v1563 = vsub.s32 0, %v1562
          %v1564 = vrot.slane %v1559, %v1563
          %v1566 = vadd.f32 %v1547, %v1564
          %v1567 = vadd.f32 %v1548, %v1564
          %1568 = vst [vmem:[#allocation3] sm:$0xff] %v1566
          %1569 = vst [vmem:[#allocation3 + $0x8] sm:$0xff] %v1567
        $region92: #{_forward_impl.1} parent=59 // pred_fallthru
          _
        %v1570 = vld [vmem:[#allocation2] sm:$0xf]
        %v1571 = vld [vmem:[#allocation2 + $0x4] sm:$0xf]
        %v1572 = vld [vmem:[#allocation12] sm:$0xff]
        %v1573 = vld [vmem:[#allocation12 + $0x8] sm:$0xff]
        %v1574 = vld [vmem:[#allocation12 + $0x10] sm:$0xff]
        %v1575 = vld [vmem:[#allocation12 + $0x18] sm:$0xff]
        %v1576 = vld [vmem:[#allocation12 + $0x20] sm:$0xff]
        %v1577 = vld [vmem:[#allocation12 + $0x28] sm:$0xff]
        %v1578 = vld [vmem:[#allocation12 + $0x30] sm:$0xff]
        %v1579 = vld [vmem:[#allocation12 + $0x38] sm:$0xff]
        %v1580 = vld [vmem:[#allocation12 + $0x40] sm:$0xff]
        %v1581 = vld [vmem:[#allocation12 + $0x48] sm:$0xff]
        %v1582 = vld [vmem:[#allocation12 + $0x50] sm:$0xff]
        %v1583 = vld [vmem:[#allocation12 + $0x58] sm:$0xff]
        %v1584 = vld [vmem:[#allocation12 + $0x60] sm:$0xff]
        %v1585 = vld [vmem:[#allocation12 + $0x68] sm:$0xff]
        %v1586 = vld [vmem:[#allocation12 + $0x70] sm:$0xff]
        %v1587 = vld [vmem:[#allocation12 + $0x78] sm:$0xff]
        %v1588 = vld [vmem:[%s572] sm:$0x3]
        %v1590 = vlaneseq
        %v1591 = vshrl.u32 %v1590, 7
        %v1592 = vsub.s32 0, %v1591
        %v1593 = vrot.slane %v1588, %v1592
        %v1594 = vlaneseq
        %v1595 = vshrl.u32 %v1594, 7
        %v1596 = vsub.s32 1, %v1595
        %v1597 = vrot.slane %v1588, %v1596
        %v1602 = vunpack.c.l.b16 %v1570
        %v1603 = vunpack.c.l.b16 %v1571
        %v1604 = vpack.c.b16 %v1603, %v1602
        %v1622 = vunpack.c.l.b16 %v1572
        %v1623 = vunpack.c.h.b16 %v1572
        %v1624 = vunpack.c.l.b16 %v1573
        %v1625 = vunpack.c.h.b16 %v1573
        %v1626 = vunpack.c.l.b16 %v1574
        %v1627 = vunpack.c.h.b16 %v1574
        %v1628 = vunpack.c.l.b16 %v1575
        %v1629 = vunpack.c.h.b16 %v1575
        %v1630 = vunpack.c.l.b16 %v1576
        %v1631 = vunpack.c.h.b16 %v1576
        %v1632 = vunpack.c.l.b16 %v1577
        %v1633 = vunpack.c.h.b16 %v1577
        %v1634 = vunpack.c.l.b16 %v1578
        %v1635 = vunpack.c.h.b16 %v1578
        %v1636 = vunpack.c.l.b16 %v1579
        %v1637 = vunpack.c.h.b16 %v1579
        %v1638 = vunpack.c.l.b16 %v1580
        %v1639 = vunpack.c.h.b16 %v1580
        %v1640 = vunpack.c.l.b16 %v1581
        %v1641 = vunpack.c.h.b16 %v1581
        %v1642 = vunpack.c.l.b16 %v1582
        %v1643 = vunpack.c.h.b16 %v1582
        %v1644 = vunpack.c.l.b16 %v1583
        %v1645 = vunpack.c.h.b16 %v1583
        %v1646 = vunpack.c.l.b16 %v1584
        %v1647 = vunpack.c.h.b16 %v1584
        %v1648 = vunpack.c.l.b16 %v1585
        %v1649 = vunpack.c.h.b16 %v1585
        %v1650 = vunpack.c.l.b16 %v1586
        %v1651 = vunpack.c.h.b16 %v1586
        %v1652 = vunpack.c.l.b16 %v1587
        %v1653 = vunpack.c.h.b16 %v1587
        %v1654 = vpack.c.b16 %v1624, %v1622
        %v1655 = vpack.c.b16 %v1625, %v1623
        %v1656 = vpack.c.b16 %v1628, %v1626
        %v1657 = vpack.c.b16 %v1629, %v1627
        %v1658 = vpack.c.b16 %v1632, %v1630
        %v1659 = vpack.c.b16 %v1633, %v1631
        %v1660 = vpack.c.b16 %v1636, %v1634
        %v1661 = vpack.c.b16 %v1637, %v1635
        %v1662 = vpack.c.b16 %v1640, %v1638
        %v1663 = vpack.c.b16 %v1641, %v1639
        %v1664 = vpack.c.b16 %v1644, %v1642
        %v1665 = vpack.c.b16 %v1645, %v1643
        %v1666 = vpack.c.b16 %v1648, %v1646
        %v1667 = vpack.c.b16 %v1649, %v1647
        %v1668 = vpack.c.b16 %v1652, %v1650
        %v1669 = vpack.c.b16 %v1653, %v1651
        %1686 = vmatprep.subr.bf16.mxu0 %v1669
        %1687 = vmatpush1.bf16.msra.mxu0 %v1668
        %1688 = vmatprep.subr.bf16.mxu0 %v1667
        %1689 = vmatpush1.bf16.msra.mxu0 %v1666
        %1690 = vmatprep.subr.bf16.mxu0 %v1665
        %1691 = vmatpush1.bf16.msra.mxu0 %v1664
        %1692 = vmatprep.subr.bf16.mxu0 %v1663
        %1693 = vmatpush1.bf16.msra.mxu0 %v1662
        %1694 = vmatprep.subr.bf16.mxu0 %v1661
        %1695 = vmatpush1.bf16.msra.mxu0 %v1660
        %1696 = vmatprep.subr.bf16.mxu0 %v1659
        %1697 = vmatpush1.bf16.msra.mxu0 %v1658
        %1698 = vmatprep.subr.bf16.mxu0 %v1657
        %1699 = vmatpush1.bf16.msra.mxu0 %v1656
        %1700 = vmatprep.subr.bf16.mxu0 %v1655
        %1701 = vmatpush1.bf16.msra.mxu0 %v1654
        %1702 = vmatprep.subr.bf16.mxu0 0
        %1703 = vmatpush2.bf16.msra.mxu0 0
        %1704 = vmatprep.subr.bf16.mxu0 0
        %1705 = vmatpush2.bf16.msra.mxu0 0
        %1706 = vmatprep.subr.bf16.mxu0 0
        %1707 = vmatpush2.bf16.msra.mxu0 0
        %1708 = vmatprep.subr.bf16.mxu0 0
        %1709 = vmatpush2.bf16.msra.mxu0 0
        %1710 = vmatprep.subr.bf16.mxu0 0
        %1711 = vmatpush2.bf16.msra.mxu0 0
        %1712 = vmatprep.subr.bf16.mxu0 0
        %1713 = vmatpush2.bf16.msra.mxu0 0
        %1714 = vmatprep.subr.bf16.mxu0 0
        %1715 = vmatpush2.bf16.msra.mxu0 0
        %1716 = vmatprep.subr.bf16.mxu0 0
        %1717 = vmatpush2.bf16.msra.mxu0 0
        %1718 = vmatprep.mubr.bf16.mxu0 0
        %1719 = vmatmul.mubr.bf16.gmra.mxu0 %v1604
        %v1720 = vpop.f32.mrf.mxu0
        %v1721 = vadd.f32 %v1593, %v1720
        %v1722 = vpop.f32.mrf.mxu0
        %v1723 = vadd.f32 %v1597, %v1722
        %v1724 = vpop.f32.mrf.mxu0
        %v1725 = vadd.f32 %v1593, %v1724
        %v1726 = vpop.f32.mrf.mxu0
        %v1727 = vadd.f32 %v1597, %v1726
        %1728 = vdwg.mxu0
        %v1729 = vmax.f32 %v1721, 0.0
        %v1730 = vmax.f32 %v1723, 0.0
        %v1731 = vmax.f32 %v1725, 0.0
        %v1732 = vmax.f32 %v1727, 0.0
        %v1733 = vld [vmem:[#allocation3] sm:$0xff]
        %v1734 = vld [vmem:[#allocation3 + $0x8] sm:$0xff]
        %v1735 = vpack.c.bf16 %v1731, %v1729
        %v1736 = vpack.c.bf16 %v1732, %v1730
        %v1737 = vld [vmem:[#allocation13] sm:$0xf]
        %v1738 = vld [vmem:[#allocation13 + $0x4] sm:$0xf]
        %v1739 = vld [vmem:[#allocation13 + $0x8] sm:$0xf]
        %v1740 = vld [vmem:[#allocation13 + $0xc] sm:$0xf]
        %v1741 = vld [vmem:[#allocation13 + $0x10] sm:$0xf]
        %v1742 = vld [vmem:[#allocation13 + $0x14] sm:$0xf]
        %v1743 = vld [vmem:[#allocation13 + $0x18] sm:$0xf]
        %v1744 = vld [vmem:[#allocation13 + $0x1c] sm:$0xf]
        %v1745 = vld [vmem:[#allocation13 + $0x20] sm:$0xf]
        %v1746 = vld [vmem:[#allocation13 + $0x24] sm:$0xf]
        %v1747 = vld [vmem:[#allocation13 + $0x28] sm:$0xf]
        %v1748 = vld [vmem:[#allocation13 + $0x2c] sm:$0xf]
        %v1749 = vld [vmem:[#allocation13 + $0x30] sm:$0xf]
        %v1750 = vld [vmem:[#allocation13 + $0x34] sm:$0xf]
        %v1751 = vld [vmem:[#allocation13 + $0x38] sm:$0xf]
        %v1752 = vld [vmem:[#allocation13 + $0x3c] sm:$0xf]
        %v1753 = vld [vmem:[#allocation13 + $0x40] sm:$0xf]
        %v1754 = vld [vmem:[#allocation13 + $0x44] sm:$0xf]
        %v1755 = vld [vmem:[#allocation13 + $0x48] sm:$0xf]
        %v1756 = vld [vmem:[#allocation13 + $0x4c] sm:$0xf]
        %v1757 = vld [vmem:[#allocation13 + $0x50] sm:$0xf]
        %v1758 = vld [vmem:[#allocation13 + $0x54] sm:$0xf]
        %v1759 = vld [vmem:[#allocation13 + $0x58] sm:$0xf]
        %v1760 = vld [vmem:[#allocation13 + $0x5c] sm:$0xf]
        %v1761 = vld [vmem:[#allocation13 + $0x60] sm:$0xf]
        %v1762 = vld [vmem:[#allocation13 + $0x64] sm:$0xf]
        %v1763 = vld [vmem:[#allocation13 + $0x68] sm:$0xf]
        %v1764 = vld [vmem:[#allocation13 + $0x6c] sm:$0xf]
        %v1765 = vld [vmem:[#allocation13 + $0x70] sm:$0xf]
        %v1766 = vld [vmem:[#allocation13 + $0x74] sm:$0xf]
        %v1767 = vld [vmem:[#allocation13 + $0x78] sm:$0xf]
        %v1768 = vld [vmem:[#allocation13 + $0x7c] sm:$0xf]
        %v1801 = vunpack.c.l.b16 %v1737
        %v1802 = vunpack.c.l.b16 %v1738
        %v1803 = vunpack.c.l.b16 %v1739
        %v1804 = vunpack.c.l.b16 %v1740
        %v1805 = vunpack.c.l.b16 %v1741
        %v1806 = vunpack.c.l.b16 %v1742
        %v1807 = vunpack.c.l.b16 %v1743
        %v1808 = vunpack.c.l.b16 %v1744
        %v1809 = vunpack.c.l.b16 %v1745
        %v1810 = vunpack.c.l.b16 %v1746
        %v1811 = vunpack.c.l.b16 %v1747
        %v1812 = vunpack.c.l.b16 %v1748
        %v1813 = vunpack.c.l.b16 %v1749
        %v1814 = vunpack.c.l.b16 %v1750
        %v1815 = vunpack.c.l.b16 %v1751
        %v1816 = vunpack.c.l.b16 %v1752
        %v1817 = vunpack.c.l.b16 %v1753
        %v1818 = vunpack.c.l.b16 %v1754
        %v1819 = vunpack.c.l.b16 %v1755
        %v1820 = vunpack.c.l.b16 %v1756
        %v1821 = vunpack.c.l.b16 %v1757
        %v1822 = vunpack.c.l.b16 %v1758
        %v1823 = vunpack.c.l.b16 %v1759
        %v1824 = vunpack.c.l.b16 %v1760
        %v1825 = vunpack.c.l.b16 %v1761
        %v1826 = vunpack.c.l.b16 %v1762
        %v1827 = vunpack.c.l.b16 %v1763
        %v1828 = vunpack.c.l.b16 %v1764
        %v1829 = vunpack.c.l.b16 %v1765
        %v1830 = vunpack.c.l.b16 %v1766
        %v1831 = vunpack.c.l.b16 %v1767
        %v1832 = vunpack.c.l.b16 %v1768
        %v1833 = vpack.c.b16 %v1802, %v1801
        %v1834 = vpack.c.b16 %v1804, %v1803
        %v1835 = vpack.c.b16 %v1806, %v1805
        %v1836 = vpack.c.b16 %v1808, %v1807
        %v1837 = vpack.c.b16 %v1810, %v1809
        %v1838 = vpack.c.b16 %v1812, %v1811
        %v1839 = vpack.c.b16 %v1814, %v1813
        %v1840 = vpack.c.b16 %v1816, %v1815
        %v1841 = vpack.c.b16 %v1818, %v1817
        %v1842 = vpack.c.b16 %v1820, %v1819
        %v1843 = vpack.c.b16 %v1822, %v1821
        %v1844 = vpack.c.b16 %v1824, %v1823
        %v1845 = vpack.c.b16 %v1826, %v1825
        %v1846 = vpack.c.b16 %v1828, %v1827
        %v1847 = vpack.c.b16 %v1830, %v1829
        %v1848 = vpack.c.b16 %v1832, %v1831
        %1865 = vmatprep.subr.bf16.mxu0 0
        %1866 = vmatpush1.bf16.msra.mxu0 %v1840
        %1867 = vmatprep.subr.bf16.mxu0 0
        %1868 = vmatpush1.bf16.msra.mxu0 %v1839
        %1869 = vmatprep.subr.bf16.mxu0 0
        %1870 = vmatpush1.bf16.msra.mxu0 %v1838
        %1871 = vmatprep.subr.bf16.mxu0 0
        %1872 = vmatpush1.bf16.msra.mxu0 %v1837
        %1873 = vmatprep.subr.bf16.mxu0 0
        %1874 = vmatpush1.bf16.msra.mxu0 %v1836
        %1875 = vmatprep.subr.bf16.mxu0 0
        %1876 = vmatpush1.bf16.msra.mxu0 %v1835
        %1877 = vmatprep.subr.bf16.mxu0 0
        %1878 = vmatpush1.bf16.msra.mxu0 %v1834
        %1879 = vmatprep.subr.bf16.mxu0 0
        %1880 = vmatpush1.bf16.msra.mxu0 %v1833
        %1881 = vmatprep.subr.bf16.mxu0 0
        %1882 = vmatpush2.bf16.msra.mxu0 %v1848
        %1883 = vmatprep.subr.bf16.mxu0 0
        %1884 = vmatpush2.bf16.msra.mxu0 %v1847
        %1885 = vmatprep.subr.bf16.mxu0 0
        %1886 = vmatpush2.bf16.msra.mxu0 %v1846
        %1887 = vmatprep.subr.bf16.mxu0 0
        %1888 = vmatpush2.bf16.msra.mxu0 %v1845
        %1889 = vmatprep.subr.bf16.mxu0 0
        %1890 = vmatpush2.bf16.msra.mxu0 %v1844
        %1891 = vmatprep.subr.bf16.mxu0 0
        %1892 = vmatpush2.bf16.msra.mxu0 %v1843
        %1893 = vmatprep.subr.bf16.mxu0 0
        %1894 = vmatpush2.bf16.msra.mxu0 %v1842
        %1895 = vmatprep.subr.bf16.mxu0 0
        %1896 = vmatpush2.bf16.msra.mxu0 %v1841
        %1897 = vmatprep.mubr.bf16.mxu0 %v1736
        %1898 = vmatmul.mubr.bf16.gmra.mxu0 %v1735
        %v1899 = vpop.f32.mrf.mxu0
        %v1900 = vadd.f32 0.0, %v1899
        %v1901 = vpop.f32.mrf.mxu0
        %v1902 = vpop.f32.mrf.mxu0
        %v1903 = vadd.f32 0.0, %v1902
        %v1904 = vpop.f32.mrf.mxu0
        %1905 = vdwg.mxu0
        %v1906 = vadd.f32 %v1733, %v1900
        %v1907 = vadd.f32 %v1734, %v1903
        %1908 = vst [vmem:[#allocation3] sm:$0xff] %v1906
        %1909 = vst [vmem:[#allocation3 + $0x8] sm:$0xff] %v1907
        // Predicated region
        $region93: #{_forward_impl.1} parent=59 // pred_check
          %p1910 = pneg %p576
        $region94: #{_forward_impl.1} parent=59 // pred_check_branch
          %1912 = sbr.rel (%p1910) target = $region96
        $region95: #{_forward_impl.1} parent=59 // pred_region
          %v1913 = vld [vmem:[#allocation3] sm:$0xff]
          %v1914 = vld [vmem:[#allocation3 + $0x8] sm:$0xff]
          %1915 = vadd.xlane.f32.xlu0 %v1913
          %v1916 = vpop.xlane.xlu0 %1915
          %1917 = vadd.xlane.f32.xlu0 %v1914
          %v1918 = vpop.xlane.xlu0 %1917
          %v1919 = vrcp.pop 128.0
          %v1920 = vmul.f32 %v1916, %v1919
          %v1921 = vmul.f32 %v1918, %v1919
          %v1922 = vsub.f32 %v1913, %v1920
          %v1923 = vsub.f32 %v1914, %v1921
          %v1924 = vmul.f32 %v1922, %v1922
          %v1925 = vmul.f32 %v1923, %v1923
          %1926 = vadd.xlane.f32.xlu0 %v1924
          %v1927 = vpop.xlane.xlu0 %1926
          %1928 = vadd.xlane.f32.xlu0 %v1925
          %v1929 = vpop.xlane.xlu0 %1928
          %v1930 = vmul.f32 %v1927, %v1919
          %v1931 = vmul.f32 %v1929, %v1919
          %v1932 = vadd.f32 %v1930, 1e-05
          %v1933 = vadd.f32 %v1931, 1e-05
          %v1934 = vrsqrt.pop %v1932
          %v1935 = vrsqrt.pop %v1933
          %v1936 = vmul.f32 %v1922, %v1934
          %v1937 = vmul.f32 %v1923, %v1935
          %1938 = vst [vmem:[%s560] sm:$0xff] %v1936
          %1939 = vst [vmem:[%s560 + $0x8] sm:$0xff] %v1937
        $region96: #{_forward_impl.1} parent=59 // pred_fallthru
          _
        %s1940 = sand.u32 %s292, 1
        %s1941 = scalar_lea.sflag [#allocation6], %s1940
        %s1942 = sand.u32 %s292, 1
        %s1943 = smul.addr %s1942, 16
        %s1944 = scalar_lea.vmem [#allocation16], %s1943
        %s1945 = sand.u32 %s318, 1
        %s1946 = scalar_lea.sflag [#allocation18], %s1945
        %s1947 = sand.u32 %s318, 1
        %s1948 = smul.addr %s1947, 32
        %s1949 = scalar_lea.vmem [#allocation17], %s1948
        // Predicated region
        $region97: #{_forward_impl.1} parent=59 // pred_check
          %p1950 = pneg %p302
        $region98: #{_forward_impl.1} parent=59 // pred_check_branch
          %1952 = sbr.rel (%p1950) target = $region100
        $region99: #{_forward_impl.1} parent=59 // pred_region
          %s1954 = ssub.s32 256, 256
          %1955 = vsyncadd %s1941, %s1954
          %s1956 = smul.addr %s41, 2
          %s1957 = smul.addr %s1956, 128
          %s1958 = scalar_lea.hbm %s10, %s1957
          %s1959 = sshll.u32 %s1944, 4
          %s1960 = int_to_ptr.vmem [resolvable:$true] %s1959
          %1965 = dma.vmem_to_hbm [thread:$0]  %s1960, 256, %s1958, %s1941, 128, 128, 8
        $region100: #{_forward_impl.1} parent=59 // pred_fallthru
          _
        // Predicated region
        $region101: #{_forward_impl.1} parent=59 // pred_check
          %p1966 = pneg %p328
        $region102: #{_forward_impl.1} parent=59 // pred_check_branch
          %1968 = sbr.rel (%p1966) target = $region104
        $region103: #{_forward_impl.1} parent=59 // pred_region
          %s1970 = ssub.s32 512, 512
          %1971 = vsyncadd %s1946, %s1970
          %s1972 = smul.addr %s41, 8
          %s1973 = smul.addr %s1972, 64
          %s1974 = scalar_lea.hbm %s11, %s1973
          %s1975 = sshll.u32 %s1949, 4
          %s1976 = int_to_ptr.vmem [resolvable:$true] %s1975
          %1981 = dma.vmem_to_hbm [thread:$0]  %s1976, 512, %s1974, %s1946, 64, 64, 4
        $region104: #{_forward_impl.1} parent=59 // pred_fallthru
          _
      $region60: #{_forward_impl.1} parent=5 // pred_fallthru
        _
      %p1982 = scmp.le.s32.totalorder 2, %s32
      // Predicated region
      $region105: #{_forward_impl.1} parent=5 // pred_check
        %p1983 = pneg %p1982
      $region106: #{_forward_impl.1} parent=5 // pred_check_branch
        %1985 = sbr.rel (%p1983) target = $region108
      $region107: #{_forward_impl.1} parent=5 // pred_region
        %s1986 = ssub.s32 %s32, 2
        // Predicated region
        $region109: #{_forward_impl.1} parent=107 // pred_check
          %p1987 = pneg %p308
        $region110: #{_forward_impl.1} parent=107 // pred_check_branch
          %1989 = sbr.rel (%p1987) target = $region112
        $region111: #{_forward_impl.1} parent=107 // pred_region
          %s1990 = sand.u32 %s293, 1
          %s1991 = scalar_lea.sflag [#allocation6], %s1990
          %s1992 = sand.u32 %s293, 1
          %s1993 = smul.addr %s1992, 16
          %s1994 = scalar_lea.vmem [#allocation16], %s1993
          %1995 = dma.done %s1991, 256
        $region112: #{_forward_impl.1} parent=107 // pred_fallthru
          _
        // Predicated region
        $region113: #{_forward_impl.1} parent=107 // pred_check
          %p1996 = pneg %p334
        $region114: #{_forward_impl.1} parent=107 // pred_check_branch
          %1998 = sbr.rel (%p1996) target = $region116
        $region115: #{_forward_impl.1} parent=107 // pred_region
          %s1999 = sand.u32 %s319, 1
          %s2000 = scalar_lea.sflag [#allocation18], %s1999
          %s2001 = sand.u32 %s319, 1
          %s2002 = smul.addr %s2001, 32
          %s2003 = scalar_lea.vmem [#allocation17], %s2002
          %2004 = dma.done %s2000, 512
        $region116: #{_forward_impl.1} parent=107 // pred_fallthru
          _
      $region108: #{_forward_impl.1} parent=5 // pred_fallthru
        _
    $region6: #{_forward_impl.1} parent=1 // loop_footer
      %s36 = sadd.s32 1, %s32
    $region7: #{_forward_impl.1} parent=1 // loop_footer_branch
      %31 = sbr.rel target = $region3
    $region8: #{_forward_impl.1} parent=1 // loop_exit
      _
    %2005 = vsyncpa [#allocation5], 1
    %s2006 = scalar_lea.sflag [#allocation5], 1
    %2007 = vsyncpa %s2006, 1
    %2008 = vsyncpa [#allocation8], 1
    %s2009 = scalar_lea.sflag [#allocation8], 1
    %2010 = vsyncpa %s2009, 1
    %2011 = vsyncpa [#allocation11], 1
    %2012 = vsyncpa [#allocation14], 1
    %2013 = vsyncpa [#allocation6], 1
    %s2014 = scalar_lea.sflag [#allocation6], 1
    %2015 = vsyncpa %s2014, 1
    %2016 = vsyncpa [#allocation18], 1
    %s2017 = scalar_lea.sflag [#allocation18], 1
    %2018 = vsyncpa %s2017, 1

</llo_original>
